<compile_context>
chip_gen: v6e
topology: v6e:2x2x1
jax: 0.10.0
libtpu: 0.0.40
codegen_flags: <defaults>
</compile_context>

<pallas_src>
import jax
import jax.numpy as jnp
from jax.experimental import pallas as pl
from jax.experimental.pallas import tpu as pltpu


# ----------------------------- Pallas kernels --------------------------------

def conv_bn_stats_kernel(xa_ref, xh_ref, w_ref, b_ref,
                         y_ref, sum_ref, sq_ref, mx_ref, mn_ref):
    """Pass 1: conv(k=4,s=2,p=1) as 8 bf16 MXU matmuls over patch slices formed in
    VMEM, bias add, bf16 store of the pre-BN activation y, and f32 accumulation of
    per-(batch, outer-tile, channel) sum / sumsq / max / min."""
    TOH2, Wh, C2 = xa_ref.shape          # main block: 2*TOH padded input rows
    TOH = TOH2 // 2                      # output rows produced by this grid step
    OW = Wh - 1                          # output cols (Wh = (W+2)//2, pair-packed)
    OC = w_ref.shape[1]

    # 2*TOH+2 padded input rows are needed for TOH output rows (stride 2, k=4).
    slab = jnp.concatenate([xa_ref[...], xh_ref[...]], axis=0)    # (2*TOH+2, Wh, C2)
    x4 = slab.reshape(TOH + 1, 2, Wh, C2)                         # rows -> (pair, parity)

    wmat = w_ref[...]                                             # (16*IC, OC) bf16
    acc = jnp.zeros((TOH * OW, OC), jnp.float32)
    # 8 taps: 4 kernel rows x 2 column-pairs (width already pair-packed into C2=2*IC),
    # ordered (kh, kw, ic) to match the (kh, kw, ic)-ordered weight matrix.
    for kh in range(4):
        sel = x4[kh // 2:kh // 2 + TOH, kh % 2]                   # (TOH, Wh, C2)
        for kwp in range(2):
            lhs = sel[:, kwp:kwp + OW, :].reshape(TOH * OW, C2)   # bf16 MXU operand
            rhs = wmat[(2 * kh + kwp) * C2:(2 * kh + kwp + 1) * C2, :]
            acc = acc + jnp.dot(lhs, rhs, preferred_element_type=jnp.float32)

    y = acc + b_ref[...]                                          # f32 (TOH*OW, OC)
    y_ref[...] = y.astype(y_ref.dtype)                            # bf16 store

    @pl.when(pl.program_id(2) == 0)                               # first inner row-tile
    def _init():
        sum_ref[...] = jnp.zeros_like(sum_ref)
        sq_ref[...] = jnp.zeros_like(sq_ref)
        mx_ref[...] = jnp.full_like(mx_ref, -jnp.inf)
        mn_ref[...] = jnp.full_like(mn_ref, jnp.inf)

    sum_ref[...] += jnp.sum(y, axis=0, keepdims=True)
    sq_ref[...] += jnp.sum(y * y, axis=0, keepdims=True)
    mx_ref[...] = jnp.maximum(mx_ref[...], jnp.max(y, axis=0, keepdims=True))
    mn_ref[...] = jnp.minimum(mn_ref[...], jnp.min(y, axis=0, keepdims=True))


def o1_stats_kernel(y_ref, sc_ref, sh_ref, st_ref):
    """Pass 2: per-pixel channel mean / max of o1 = y*sc + sh (BN + channel
    attention folded into one per-batch affine); single [rows, 2] output."""
    o1 = y_ref[...].astype(jnp.float32) * sc_ref[...] + sh_ref[...]
    st_ref[...] = jnp.concatenate(
        [jnp.mean(o1, axis=-1, keepdims=True),
         jnp.max(o1, axis=-1, keepdims=True)], axis=-1)


def apply_kernel(y_ref, sc_ref, sh_ref, sm_ref, o_ref):
    """Pass 3: fused BN + channel-attention + spatial-attention scaling."""
    o1 = y_ref[...].astype(jnp.float32) * sc_ref[...] + sh_ref[...]
    o_ref[...] = o1 * jax.nn.sigmoid(sm_ref[...])


# ------------------------------- tiling helpers -------------------------------

def _vmem_budgets():
    """(working-set byte budget for tile sizing, scoped vmem_limit_bytes),
    derived per generation (v5e/v6e: 128 MiB physical VMEM, v7x: 64 MiB)."""
    phys = 128 << 20
    try:
        phys = int(getattr(pltpu.get_tpu_info(), "vmem_capacity_bytes", phys))
    except Exception:
        pass
    work = int(phys * 0.40)                        # double-buffered working-set target
    limit = min(int(phys * 0.75), work + (16 << 20))
    return work, limit


def _pass1_footprint(toh, Wh, C2, OW, OC, K):
    """Approximate pass-1 VMEM bytes: x2 double-buffered input/halo/y blocks,
    resident weight tile, accumulators, in-kernel temporaries (slab, patch, acc)."""
    bf = 2
    blk_in = 2 * (2 * toh) * Wh * C2 * bf + 2 * 2 * Wh * C2 * bf
    blk_y = 2 * toh * OW * OC * bf
    resident = 2 * K * OC * bf + 2 * OC * 4 + 8 * OC * 4
    temps = (2 * toh + 2) * Wh * C2 * bf + toh * OW * C2 * bf + 2 * toh * OW * OC * 4
    return blk_in + blk_y + resident + temps


def _pick_row_tile_oh(OH, OW, budget, Wh, C2, OC, K):
    cands = [t for t in range(OH, 0, -1)
             if OH % t == 0 and ((t * OW) % 8 == 0 or t == OH)]
    for t in cands:
        if _pass1_footprint(t, Wh, C2, OW, OC, K) <= budget:
            return t
    return cands[-1]


def _pick_row_tile_s(S, OC, budget):
    # pass 2/3 per-row bytes: y (bf16) + f32 output, double-buffered, + o1 temp.
    per_row = 2 * OC * 2 + 2 * OC * 4 + 2 * OC * 4 + 32
    cap = int(min(S, 8192, max(8, budget // max(per_row, 1))))
    for v in range(cap, 0, -1):
        if S % v == 0 and (v % 8 == 0 or v == S):
            return v
    return S


# --------------------------------- wrapper ------------------------------------

def encoder_block_pallas(x, params, *, row_tile_oh=None, row_tile_s=None):
    """x: [B, IC, H, W] (NCHW, f32).  Returns [B, OC, H//2, W//2] f32."""
    w, bias, gamma, beta, w1_t, w2_t, wsa = params
    B, IC, H, W = x.shape
    OC, _, KH, KW = w.shape
    assert (KH, KW) == (4, 4) and H % 2 == 0 and W % 2 == 0
    hp = jax.lax.Precision.HIGHEST

    OH, OW = H // 2, W // 2
    S = OH * OW
    M = B * S
    K = KH * KW * IC
    Wh = (W + 2) // 2                     # pair-packed padded width
    C2 = 2 * IC                           # channels after width pair-packing

    work_budget, vmem_limit = _vmem_budgets()

    # glue: LeakyReLU (f32, so the 0.2 slope is exact) + pad + width pair-pack +
    # bf16 cast; all fuse into one XLA pass over the (small) input.
    x_nhwc = jnp.transpose(x, (0, 2, 3, 1))
    fx = jnp.where(x_nhwc >= 0.0, x_nhwc, 0.2 * x_nhwc)
    xp = jnp.pad(fx, ((0, 0), (1, 1), (1, 1), (0, 0)))
    xp_r = xp.reshape(B, H + 2, Wh, C2).astype(jnp.bfloat16)

    # conv weight as a (kh, kw, ic)-ordered matmul matrix, bf16 MXU operand.
    w_mat = jnp.transpose(w, (2, 3, 1, 0)).reshape(K, OC).astype(jnp.bfloat16)
    bias2 = bias.reshape(1, OC).astype(jnp.float32)

    # pass-1 tiling: TOH output rows per grid step; optional outer "parallel"
    # spatial split (two partial stat accumulators) so v7x's 2 TCs are used at B=1.
    TOH = (_pick_row_tile_oh(OH, OW, work_budget, Wh, C2, OC, K)
           if row_tile_oh is None else row_tile_oh)
    assert OH % TOH == 0 and ((TOH * OW) % 8 == 0 or TOH == OH), (OH, OW, TOH)
    nT = OH // TOH
    nO = 2 if (nT % 2 == 0 and nT >= 2) else 1
    nI = nT // nO

    acc_spec = pl.BlockSpec((None, 1, OC), lambda bi, to, ti: (bi * nO + to, 0, 0))
    acc_shape = jax.ShapeDtypeStruct((B * nO, 1, OC), jnp.float32)

    # ---- pass 1: in-VMEM im2col + bf16 MXU conv + bias + BN/pool stats ----
    y, psum, psq, pmax, pmin = pl.pallas_call(
        conv_bn_stats_kernel,
        grid=(B, nO, nI),
        in_specs=[
            pl.BlockSpec((None, 2 * TOH, Wh, C2),
                         lambda bi, to, ti: (bi, to * nI + ti, 0, 0)),
            pl.BlockSpec((None, 2, Wh, C2),
                         lambda bi, to, ti: (bi, (to * nI + ti + 1) * TOH, 0, 0)),
            pl.BlockSpec((K, OC), lambda bi, to, ti: (0, 0)),
            pl.BlockSpec((1, OC), lambda bi, to, ti: (0, 0)),
        ],
        out_specs=(
            pl.BlockSpec((None, TOH * OW, OC),
                         lambda bi, to, ti: (bi, to * nI + ti, 0)),
            acc_spec, acc_spec, acc_spec, acc_spec,
        ),
        out_shape=(jax.ShapeDtypeStruct((B, S, OC), jnp.bfloat16),
                   acc_shape, acc_shape, acc_shape, acc_shape),
        compiler_params=pltpu.CompilerParams(
            dimension_semantics=("parallel", "parallel", "arbitrary"),
            vmem_limit_bytes=vmem_limit),
        cost_estimate=pl.CostEstimate(
            flops=2 * M * K * OC, transcendentals=0,
            bytes_accessed=2 * (B * (H + 2) * Wh * C2 + K * OC + M * OC)
                           + 16 * B * nO * OC),
    )(xp_r, xp_r, w_mat, bias2)

    # ---- tiny JAX glue: BN finalize + channel-attention MLP on pooled vectors ----
    # TODO(synk): for very large B*S switch the variance to a shifted/Chan combine;
    #             f32 E[x^2]-E[x]^2 is fine at these sizes but loses digits at scale.
    b_sum = psum.reshape(B, nO, OC).sum(axis=1)
    b_sq = psq.reshape(B, nO, OC).sum(axis=1)
    b_max = pmax.reshape(B, nO, OC).max(axis=1)
    b_min = pmin.reshape(B, nO, OC).min(axis=1)

    tot_sum = b_sum.sum(axis=0)
    tot_sq = b_sq.sum(axis=0)
    mean = tot_sum / M
    var = jnp.maximum(tot_sq / M - mean * mean, 0.0)      # biased (torch train mode)
    scale = gamma * jax.lax.rsqrt(var + 1e-5)
    shift = beta - mean * scale

    avg_z = (b_sum / S) * scale[None, :] + shift[None, :]           # avg-pool of BN(y)
    max_z = jnp.where(scale[None, :] >= 0.0,                        # max-pool of BN(y)
                      b_max * scale[None, :] + shift[None, :],
                      b_min * scale[None, :] + shift[None, :])

    def _mlp(v):
        h = jnp.maximum(jnp.dot(v, w1_t.T, precision=hp), 0.0)
        return jnp.dot(h, w2_t.T, precision=hp)

    att = jax.nn.sigmoid(_mlp(avg_z) + _mlp(max_z))                 # [B, OC]
    sc1 = (att * scale[None, :]).reshape(B, 1, OC).astype(jnp.float32)
    sh1 = (att * shift[None, :]).reshape(B, 1, OC).astype(jnp.float32)

    # passes 2/3 get their own (larger) row tile: per-tile footprint is only ~TS*OC.
    TS = _pick_row_tile_s(S, OC, work_budget) if row_tile_s is None else row_tile_s
    assert S % TS == 0 and (TS % 8 == 0 or TS == S), (S, TS)
    grid2 = (B, S // TS)
    par2 = pltpu.CompilerParams(dimension_semantics=("parallel", "parallel"),
                                vmem_limit_bytes=vmem_limit)

    # ---- pass 2: per-pixel channel mean/max of o1, single [B, S, 2] buffer ----
    stats = pl.pallas_call(
        o1_stats_kernel,
        grid=grid2,
        in_specs=[
            pl.BlockSpec((None, TS, OC), lambda bi, ti: (bi, ti, 0)),
            pl.BlockSpec((None, 1, OC), lambda bi, ti: (bi, 0, 0)),
            pl.BlockSpec((None, 1, OC), lambda bi, ti: (bi, 0, 0)),
        ],
        out_specs=pl.BlockSpec((None, TS, 2), lambda bi, ti: (bi, ti, 0)),
        out_shape=jax.ShapeDtypeStruct((B, S, 2), jnp.float32),
        compiler_params=par2,
    )(y, sc1, sh1)

    # 7x7 spatial-attention conv on the tiny [B, OH, OW, 2] map (negligible FLOPs).
    sa_in = stats.reshape(B, OH, OW, 2)
    wsa_hwio = jnp.transpose(wsa, (2, 3, 1, 0))                     # (7, 7, 2, 1)
    smap = jax.lax.conv_general_dilated(
        sa_in, wsa_hwio, (1, 1), ((3, 3), (3, 3)),
        dimension_numbers=('NHWC', 'HWIO', 'NHWC'), precision=hp).reshape(B, S, 1)

    # ---- pass 3: fused BN + channel-att + spatial-att scaling ----
    out = pl.pallas_call(
        apply_kernel,
        grid=grid2,
        in_specs=[
            pl.BlockSpec((None, TS, OC), lambda bi, ti: (bi, ti, 0)),
            pl.BlockSpec((None, 1, OC), lambda bi, ti: (bi, 0, 0)),
            pl.BlockSpec((None, 1, OC), lambda bi, ti: (bi, 0, 0)),
            pl.BlockSpec((None, TS, 1), lambda bi, ti: (bi, ti, 0)),
        ],
        out_specs=pl.BlockSpec((None, TS, OC), lambda bi, ti: (bi, ti, 0)),
        out_shape=jax.ShapeDtypeStruct((B, S, OC), jnp.float32),
        compiler_params=par2,
    )(y, sc1, sh1, smap)

    # TODO(synk): fold this NHWC->NCHW transpose into pass 3 (write (None, OC, TS)
    #             blocks via an in-kernel XLU transpose) once OC is a multiple of 128;
    #             at OC=16 the transposed store would be lane-sparse / risky to lower.
    return jnp.transpose(out.reshape(B, OH, OW, OC), (0, 3, 1, 2))


# ------------------------------ pure-JAX reference ----------------------------

def encoder_block_reference(x, params):
    w, b, gamma, beta, w1_t, w2_t, wsa = params
    hp = jax.lax.Precision.HIGHEST
    fx = jnp.where(x >= 0.0, x, 0.2 * x)
    fx = jax.lax.conv_general_dilated(
        fx, w, (2, 2), ((1, 1), (1, 1)),
        dimension_numbers=('NCHW', 'OIHW', 'NCHW'), precision=hp) + b[None, :, None, None]
    mean = fx.mean(axis=(0, 2, 3), keepdims=True)
    var = ((fx - mean) ** 2).mean(axis=(0, 2, 3), keepdims=True)
    fx = (fx - mean) * jax.lax.rsqrt(var + 1e-5) * gamma[None, :, None, None] + beta[None, :, None, None]
    # channel attention
    avg = fx.mean(axis=(2, 3))
    mx = fx.max(axis=(2, 3))
    def mlp(v):
        return jnp.maximum(jnp.dot(v, w1_t.T, precision=hp), 0.0) @ w2_t.T
    att = jax.nn.sigmoid(mlp(avg) + mlp(mx))
    o1 = fx * att[:, :, None, None]
    # spatial attention
    s = jnp.concatenate([o1.mean(axis=1, keepdims=True), o1.max(axis=1, keepdims=True)], axis=1)
    satt = jax.lax.conv_general_dilated(
        s, wsa, (1, 1), ((3, 3), (3, 3)),
        dimension_numbers=('NCHW', 'OIHW', 'NCHW'), precision=hp)
    return o1 * jax.nn.sigmoid(satt)


# ----------------------------------- main --------------------------------------

if __name__ == "__main__":
    B, IC, H, W = 2, 4, 16, 16
    OC, KH, KW = 16, 4, 4
    Cr = OC // 4          # reduction = sqrt4(16) = 4  ->  hidden channels = 16 // 4

    key = jax.random.PRNGKey(0)
    ks = jax.random.split(key, 8)
    x = jax.random.normal(ks[0], (B, IC, H, W), jnp.float32)

    conv_w = 0.1 * jax.random.normal(ks[1], (OC, IC, KH, KW), jnp.float32)
    conv_b = 0.1 * jax.random.normal(ks[2], (OC,), jnp.float32)
    bn_gamma = 1.0 + 0.1 * jax.random.normal(ks[3], (OC,), jnp.float32)
    bn_beta = 0.1 * jax.random.normal(ks[4], (OC,), jnp.float32)
    ca_w1 = 0.2 * jax.random.normal(ks[5], (Cr, OC), jnp.float32)   # fc1 weight
    ca_w2 = 0.2 * jax.random.normal(ks[6], (OC, Cr), jnp.float32)   # fc2 weight
    sa_w = 0.2 * jax.random.normal(ks[7], (1, 2, 7, 7), jnp.float32)

    params = (conv_w, conv_b, bn_gamma, bn_beta, ca_w1, ca_w2, sa_w)

    # row_tile_oh=2 / row_tile_s=32 force multiple row-tiles (and the 2-way outer
    # spatial split) at this toy size so the halo, accumulator-init and
    # "arbitrary"-axis paths are all exercised.
    out = encoder_block_pallas(x, params, row_tile_oh=2, row_tile_s=32)
    out = jax.block_until_ready(out)

    ref = jax.block_until_ready(encoder_block_reference(x, params))

    assert out.shape == (B, OC, H // 2, W // 2), out.shape
    # bf16 MXU operands + bf16 y storage (per perf review): tolerance relaxed from
    # the f32-parity 2e-3 to 2e-2 (observed error is a few 1e-3).
    assert jnp.allclose(out, ref, atol=2e-2, rtol=2e-2), float(jnp.max(jnp.abs(out - ref)))

    print("KERNEL_OK")
</pallas_src>

<mosaic_0001>
module attributes {stable_mosaic.version = 11 : i64} {
  func.func @conv_bn_stats_kernel(%arg0: i32, %arg1: i32, %arg2: i32, %arg3: memref<1x4x9x8xbf16, #tpu.memory_space<vmem>>, %arg4: memref<1x2x9x8xbf16, #tpu.memory_space<vmem>>, %arg5: memref<64x16xbf16, #tpu.memory_space<vmem>>, %arg6: memref<1x16xf32, #tpu.memory_space<vmem>>, %arg7: memref<1x16x16xbf16, #tpu.memory_space<vmem>>, %arg8: memref<1x1x16xf32, #tpu.memory_space<vmem>>, %arg9: memref<1x1x16xf32, #tpu.memory_space<vmem>>, %arg10: memref<1x1x16xf32, #tpu.memory_space<vmem>>, %arg11: memref<1x1x16xf32, #tpu.memory_space<vmem>>) attributes {dimension_semantics = [#tpu.dimension_semantics<parallel>, #tpu.dimension_semantics<parallel>, #tpu.dimension_semantics<arbitrary>], iteration_bounds = array<i64: 2, 2, 2>, scalar_prefetch = 0 : i64, scratch_operands = 0 : i64, tpu.core_type = #tpu.core_type<tc>, window_params = [{transform_indices = @transform_0, window_bounds = array<i64: 1, 4, 9, 8>}, {transform_indices = @transform_1, window_bounds = array<i64: 1, 2, 9, 8>}, {pipeline_mode = #tpu.pipeline_mode<synchronous>, transform_indices = @transform_2, window_bounds = array<i64: 64, 16>}, {pipeline_mode = #tpu.pipeline_mode<synchronous>, transform_indices = @transform_3, window_bounds = array<i64: 1, 16>}, {transform_indices = @transform_4, window_bounds = array<i64: 1, 16, 16>}, {transform_indices = @transform_5, window_bounds = array<i64: 1, 1, 16>}, {transform_indices = @transform_6, window_bounds = array<i64: 1, 1, 16>}, {transform_indices = @transform_7, window_bounds = array<i64: 1, 1, 16>}, {transform_indices = @transform_8, window_bounds = array<i64: 1, 1, 16>}]} {
    %c0 = arith.constant 0 : index
    %c0_0 = arith.constant 0 : index
    %c0_1 = arith.constant 0 : index
    %c0_2 = arith.constant 0 : index
    %0 = vector.load %arg3[%c0, %c0_0, %c0_1, %c0_2] : memref<1x4x9x8xbf16, #tpu.memory_space<vmem>>, vector<1x4x9x8xbf16>
    %1 = vector.shape_cast %0 : vector<1x4x9x8xbf16> to vector<4x9x8xbf16>
    %c0_3 = arith.constant 0 : index
    %c0_4 = arith.constant 0 : index
    %c0_5 = arith.constant 0 : index
    %c0_6 = arith.constant 0 : index
    %2 = vector.load %arg4[%c0_3, %c0_4, %c0_5, %c0_6] : memref<1x2x9x8xbf16, #tpu.memory_space<vmem>>, vector<1x2x9x8xbf16>
    %3 = vector.shape_cast %2 : vector<1x2x9x8xbf16> to vector<2x9x8xbf16>
    %4 = tpu.concatenate %1, %3 in 0 : vector<4x9x8xbf16>, vector<2x9x8xbf16> -> vector<6x9x8xbf16>
    %5 = vector.shape_cast %4 : vector<6x9x8xbf16> to vector<3x2x9x8xbf16>
    %c0_7 = arith.constant 0 : index
    %c0_8 = arith.constant 0 : index
    %6 = vector.load %arg5[%c0_7, %c0_8] : memref<64x16xbf16, #tpu.memory_space<vmem>>, vector<64x16xbf16>
    %cst = arith.constant 0.000000e+00 : f32
    %7 = vector.broadcast %cst : f32 to vector<16x16xf32>
    %8 = vector.extract_strided_slice %5 {offsets = [0, 0, 0, 0], sizes = [2, 1, 9, 8], strides = [1, 1, 1, 1]} : vector<3x2x9x8xbf16> to vector<2x1x9x8xbf16>
    %9 = vector.shape_cast %8 : vector<2x1x9x8xbf16> to vector<2x9x8xbf16>
    %10 = vector.extract_strided_slice %9 {offsets = [0, 0, 0], sizes = [2, 8, 8], strides = [1, 1, 1]} : vector<2x9x8xbf16> to vector<2x8x8xbf16>
    %11 = vector.shape_cast %10 : vector<2x8x8xbf16> to vector<16x8xbf16>
    %12 = vector.extract_strided_slice %6 {offsets = [0, 0], sizes = [8, 16], strides = [1, 1]} : vector<64x16xbf16> to vector<8x16xbf16>
    %cst_9 = arith.constant dense<0.000000e+00> : vector<16x16xf32>
    %13 = tpu.matmul %11, %12, %cst_9 {dimension_numbers = #tpu.dot_dimension_numbers<[1], [0], [0], [1], [0, 0, 1, 1], [], []>} : vector<16x8xbf16>, vector<8x16xbf16>, vector<16x16xf32> -> vector<16x16xf32>
    %14 = arith.addf %7, %13 : vector<16x16xf32>
    %15 = vector.extract_strided_slice %9 {offsets = [0, 1, 0], sizes = [2, 8, 8], strides = [1, 1, 1]} : vector<2x9x8xbf16> to vector<2x8x8xbf16>
    %16 = vector.shape_cast %15 : vector<2x8x8xbf16> to vector<16x8xbf16>
    %17 = vector.extract_strided_slice %6 {offsets = [8, 0], sizes = [8, 16], strides = [1, 1]} : vector<64x16xbf16> to vector<8x16xbf16>
    %cst_10 = arith.constant dense<0.000000e+00> : vector<16x16xf32>
    %18 = tpu.matmul %16, %17, %cst_10 {dimension_numbers = #tpu.dot_dimension_numbers<[1], [0], [0], [1], [0, 0, 1, 1], [], []>} : vector<16x8xbf16>, vector<8x16xbf16>, vector<16x16xf32> -> vector<16x16xf32>
    %19 = arith.addf %14, %18 : vector<16x16xf32>
    %20 = vector.extract_strided_slice %5 {offsets = [0, 1, 0, 0], sizes = [2, 1, 9, 8], strides = [1, 1, 1, 1]} : vector<3x2x9x8xbf16> to vector<2x1x9x8xbf16>
    %21 = vector.shape_cast %20 : vector<2x1x9x8xbf16> to vector<2x9x8xbf16>
    %22 = vector.extract_strided_slice %21 {offsets = [0, 0, 0], sizes = [2, 8, 8], strides = [1, 1, 1]} : vector<2x9x8xbf16> to vector<2x8x8xbf16>
    %23 = vector.shape_cast %22 : vector<2x8x8xbf16> to vector<16x8xbf16>
    %24 = vector.extract_strided_slice %6 {offsets = [16, 0], sizes = [8, 16], strides = [1, 1]} : vector<64x16xbf16> to vector<8x16xbf16>
    %cst_11 = arith.constant dense<0.000000e+00> : vector<16x16xf32>
    %25 = tpu.matmul %23, %24, %cst_11 {dimension_numbers = #tpu.dot_dimension_numbers<[1], [0], [0], [1], [0, 0, 1, 1], [], []>} : vector<16x8xbf16>, vector<8x16xbf16>, vector<16x16xf32> -> vector<16x16xf32>
    %26 = arith.addf %19, %25 : vector<16x16xf32>
    %27 = vector.extract_strided_slice %21 {offsets = [0, 1, 0], sizes = [2, 8, 8], strides = [1, 1, 1]} : vector<2x9x8xbf16> to vector<2x8x8xbf16>
    %28 = vector.shape_cast %27 : vector<2x8x8xbf16> to vector<16x8xbf16>
    %29 = vector.extract_strided_slice %6 {offsets = [24, 0], sizes = [8, 16], strides = [1, 1]} : vector<64x16xbf16> to vector<8x16xbf16>
    %cst_12 = arith.constant dense<0.000000e+00> : vector<16x16xf32>
    %30 = tpu.matmul %28, %29, %cst_12 {dimension_numbers = #tpu.dot_dimension_numbers<[1], [0], [0], [1], [0, 0, 1, 1], [], []>} : vector<16x8xbf16>, vector<8x16xbf16>, vector<16x16xf32> -> vector<16x16xf32>
    %31 = arith.addf %26, %30 : vector<16x16xf32>
    %32 = vector.extract_strided_slice %5 {offsets = [1, 0, 0, 0], sizes = [2, 1, 9, 8], strides = [1, 1, 1, 1]} : vector<3x2x9x8xbf16> to vector<2x1x9x8xbf16>
    %33 = vector.shape_cast %32 : vector<2x1x9x8xbf16> to vector<2x9x8xbf16>
    %34 = vector.extract_strided_slice %33 {offsets = [0, 0, 0], sizes = [2, 8, 8], strides = [1, 1, 1]} : vector<2x9x8xbf16> to vector<2x8x8xbf16>
    %35 = vector.shape_cast %34 : vector<2x8x8xbf16> to vector<16x8xbf16>
    %36 = vector.extract_strided_slice %6 {offsets = [32, 0], sizes = [8, 16], strides = [1, 1]} : vector<64x16xbf16> to vector<8x16xbf16>
    %cst_13 = arith.constant dense<0.000000e+00> : vector<16x16xf32>
    %37 = tpu.matmul %35, %36, %cst_13 {dimension_numbers = #tpu.dot_dimension_numbers<[1], [0], [0], [1], [0, 0, 1, 1], [], []>} : vector<16x8xbf16>, vector<8x16xbf16>, vector<16x16xf32> -> vector<16x16xf32>
    %38 = arith.addf %31, %37 : vector<16x16xf32>
    %39 = vector.extract_strided_slice %33 {offsets = [0, 1, 0], sizes = [2, 8, 8], strides = [1, 1, 1]} : vector<2x9x8xbf16> to vector<2x8x8xbf16>
    %40 = vector.shape_cast %39 : vector<2x8x8xbf16> to vector<16x8xbf16>
    %41 = vector.extract_strided_slice %6 {offsets = [40, 0], sizes = [8, 16], strides = [1, 1]} : vector<64x16xbf16> to vector<8x16xbf16>
    %cst_14 = arith.constant dense<0.000000e+00> : vector<16x16xf32>
    %42 = tpu.matmul %40, %41, %cst_14 {dimension_numbers = #tpu.dot_dimension_numbers<[1], [0], [0], [1], [0, 0, 1, 1], [], []>} : vector<16x8xbf16>, vector<8x16xbf16>, vector<16x16xf32> -> vector<16x16xf32>
    %43 = arith.addf %38, %42 : vector<16x16xf32>
    %44 = vector.extract_strided_slice %5 {offsets = [1, 1, 0, 0], sizes = [2, 1, 9, 8], strides = [1, 1, 1, 1]} : vector<3x2x9x8xbf16> to vector<2x1x9x8xbf16>
    %45 = vector.shape_cast %44 : vector<2x1x9x8xbf16> to vector<2x9x8xbf16>
    %46 = vector.extract_strided_slice %45 {offsets = [0, 0, 0], sizes = [2, 8, 8], strides = [1, 1, 1]} : vector<2x9x8xbf16> to vector<2x8x8xbf16>
    %47 = vector.shape_cast %46 : vector<2x8x8xbf16> to vector<16x8xbf16>
    %48 = vector.extract_strided_slice %6 {offsets = [48, 0], sizes = [8, 16], strides = [1, 1]} : vector<64x16xbf16> to vector<8x16xbf16>
    %cst_15 = arith.constant dense<0.000000e+00> : vector<16x16xf32>
    %49 = tpu.matmul %47, %48, %cst_15 {dimension_numbers = #tpu.dot_dimension_numbers<[1], [0], [0], [1], [0, 0, 1, 1], [], []>} : vector<16x8xbf16>, vector<8x16xbf16>, vector<16x16xf32> -> vector<16x16xf32>
    %50 = arith.addf %43, %49 : vector<16x16xf32>
    %51 = vector.extract_strided_slice %45 {offsets = [0, 1, 0], sizes = [2, 8, 8], strides = [1, 1, 1]} : vector<2x9x8xbf16> to vector<2x8x8xbf16>
    %52 = vector.shape_cast %51 : vector<2x8x8xbf16> to vector<16x8xbf16>
    %53 = vector.extract_strided_slice %6 {offsets = [56, 0], sizes = [8, 16], strides = [1, 1]} : vector<64x16xbf16> to vector<8x16xbf16>
    %cst_16 = arith.constant dense<0.000000e+00> : vector<16x16xf32>
    %54 = tpu.matmul %52, %53, %cst_16 {dimension_numbers = #tpu.dot_dimension_numbers<[1], [0], [0], [1], [0, 0, 1, 1], [], []>} : vector<16x8xbf16>, vector<8x16xbf16>, vector<16x16xf32> -> vector<16x16xf32>
    %55 = arith.addf %50, %54 : vector<16x16xf32>
    %c0_17 = arith.constant 0 : index
    %c0_18 = arith.constant 0 : index
    %56 = vector.load %arg6[%c0_17, %c0_18] : memref<1x16xf32, #tpu.memory_space<vmem>>, vector<1x16xf32>
    %57 = vector.broadcast %56 : vector<1x16xf32> to vector<16x16xf32>
    %58 = arith.addf %55, %57 : vector<16x16xf32>
    %59 = arith.truncf %58 : vector<16x16xf32> to vector<16x16xbf16>
    %c0_19 = arith.constant 0 : index
    %c0_20 = arith.constant 0 : index
    %c0_21 = arith.constant 0 : index
    %60 = vector.load %arg7[%c0_19, %c0_20, %c0_21] : memref<1x16x16xbf16, #tpu.memory_space<vmem>>, vector<1x16x16xbf16>
    %61 = vector.shape_cast %60 : vector<1x16x16xbf16> to vector<16x16xbf16>
    %62 = vector.shape_cast %59 : vector<16x16xbf16> to vector<1x16x16xbf16>
    tpu.vector_store %arg7[%c0_19, %c0_20, %c0_21], %62 {strides = array<i32>} : memref<1x16x16xbf16, #tpu.memory_space<vmem>>, vector<1x16x16xbf16>,
    %c0_i32 = arith.constant 0 : i32
    %63 = arith.cmpi eq, %arg2, %c0_i32 : i32
    %64 = arith.extui %63 : i1 to i32
    %c0_i32_22 = arith.constant 0 : i32
    %65 = arith.cmpi ne, %64, %c0_i32_22 : i32
    scf.if %65 {
      %cst_51 = arith.constant 0.000000e+00 : f32
      %99 = vector.broadcast %cst_51 : f32 to vector<1x16xf32>
      %c0_52 = arith.constant 0 : index
      %c0_53 = arith.constant 0 : index
      %c0_54 = arith.constant 0 : index
      %100 = vector.load %arg8[%c0_52, %c0_53, %c0_54] : memref<1x1x16xf32, #tpu.memory_space<vmem>>, vector<1x1x16xf32>
      %101 = vector.shape_cast %100 : vector<1x1x16xf32> to vector<1x16xf32>
      %102 = vector.shape_cast %99 : vector<1x16xf32> to vector<1x1x16xf32>
      tpu.vector_store %arg8[%c0_52, %c0_53, %c0_54], %102 {strides = array<i32>} : memref<1x1x16xf32, #tpu.memory_space<vmem>>, vector<1x1x16xf32>,
      %cst_55 = arith.constant 0.000000e+00 : f32
      %103 = vector.broadcast %cst_55 : f32 to vector<1x16xf32>
      %c0_56 = arith.constant 0 : index
      %c0_57 = arith.constant 0 : index
      %c0_58 = arith.constant 0 : index
      %104 = vector.load %arg9[%c0_56, %c0_57, %c0_58] : memref<1x1x16xf32, #tpu.memory_space<vmem>>, vector<1x1x16xf32>
      %105 = vector.shape_cast %104 : vector<1x1x16xf32> to vector<1x16xf32>
      %106 = vector.shape_cast %103 : vector<1x16xf32> to vector<1x1x16xf32>
      tpu.vector_store %arg9[%c0_56, %c0_57, %c0_58], %106 {strides = array<i32>} : memref<1x1x16xf32, #tpu.memory_space<vmem>>, vector<1x1x16xf32>,
      %cst_59 = arith.constant 0xFF800000 : f32
      %107 = vector.broadcast %cst_59 : f32 to vector<1x16xf32>
      %c0_60 = arith.constant 0 : index
      %c0_61 = arith.constant 0 : index
      %c0_62 = arith.constant 0 : index
      %108 = vector.load %arg10[%c0_60, %c0_61, %c0_62] : memref<1x1x16xf32, #tpu.memory_space<vmem>>, vector<1x1x16xf32>
      %109 = vector.shape_cast %108 : vector<1x1x16xf32> to vector<1x16xf32>
      %110 = vector.shape_cast %107 : vector<1x16xf32> to vector<1x1x16xf32>
      tpu.vector_store %arg10[%c0_60, %c0_61, %c0_62], %110 {strides = array<i32>} : memref<1x1x16xf32, #tpu.memory_space<vmem>>, vector<1x1x16xf32>,
      %cst_63 = arith.constant 0x7F800000 : f32
      %111 = vector.broadcast %cst_63 : f32 to vector<1x16xf32>
      %c0_64 = arith.constant 0 : index
      %c0_65 = arith.constant 0 : index
      %c0_66 = arith.constant 0 : index
      %112 = vector.load %arg11[%c0_64, %c0_65, %c0_66] : memref<1x1x16xf32, #tpu.memory_space<vmem>>, vector<1x1x16xf32>
      %113 = vector.shape_cast %112 : vector<1x1x16xf32> to vector<1x16xf32>
      %114 = vector.shape_cast %111 : vector<1x16xf32> to vector<1x1x16xf32>
      tpu.vector_store %arg11[%c0_64, %c0_65, %c0_66], %114 {strides = array<i32>} : memref<1x1x16xf32, #tpu.memory_space<vmem>>, vector<1x1x16xf32>,
    } else {
    }
    %c0_23 = arith.constant 0 : index
    %c0_24 = arith.constant 0 : index
    %c0_25 = arith.constant 0 : index
    %66 = vector.load %arg8[%c0_23, %c0_24, %c0_25] : memref<1x1x16xf32, #tpu.memory_space<vmem>>, vector<1x1x16xf32>
    %67 = vector.shape_cast %66 : vector<1x1x16xf32> to vector<1x16xf32>
    %cst_26 = arith.constant dense<0.000000e+00> : vector<16xf32>
    %68 = vector.multi_reduction <add>, %58, %cst_26 [0] : vector<16x16xf32> to vector<16xf32>
    %69 = vector.shape_cast %68 : vector<16xf32> to vector<1x16xf32>
    %70 = arith.addf %67, %69 : vector<1x16xf32>
    %c0_27 = arith.constant 0 : index
    %c0_28 = arith.constant 0 : index
    %c0_29 = arith.constant 0 : index
    %71 = vector.load %arg8[%c0_27, %c0_28, %c0_29] : memref<1x1x16xf32, #tpu.memory_space<vmem>>, vector<1x1x16xf32>
    %72 = vector.shape_cast %71 : vector<1x1x16xf32> to vector<1x16xf32>
    %73 = vector.shape_cast %70 : vector<1x16xf32> to vector<1x1x16xf32>
    tpu.vector_store %arg8[%c0_27, %c0_28, %c0_29], %73 {strides = array<i32>} : memref<1x1x16xf32, #tpu.memory_space<vmem>>, vector<1x1x16xf32>,
    %c0_30 = arith.constant 0 : index
    %c0_31 = arith.constant 0 : index
    %c0_32 = arith.constant 0 : index
    %74 = vector.load %arg9[%c0_30, %c0_31, %c0_32] : memref<1x1x16xf32, #tpu.memory_space<vmem>>, vector<1x1x16xf32>
    %75 = vector.shape_cast %74 : vector<1x1x16xf32> to vector<1x16xf32>
    %76 = arith.mulf %58, %58 : vector<16x16xf32>
    %cst_33 = arith.constant dense<0.000000e+00> : vector<16xf32>
    %77 = vector.multi_reduction <add>, %76, %cst_33 [0] : vector<16x16xf32> to vector<16xf32>
    %78 = vector.shape_cast %77 : vector<16xf32> to vector<1x16xf32>
    %79 = arith.addf %75, %78 : vector<1x16xf32>
    %c0_34 = arith.constant 0 : index
    %c0_35 = arith.constant 0 : index
    %c0_36 = arith.constant 0 : index
    %80 = vector.load %arg9[%c0_34, %c0_35, %c0_36] : memref<1x1x16xf32, #tpu.memory_space<vmem>>, vector<1x1x16xf32>
    %81 = vector.shape_cast %80 : vector<1x1x16xf32> to vector<1x16xf32>
    %82 = vector.shape_cast %79 : vector<1x16xf32> to vector<1x1x16xf32>
    tpu.vector_store %arg9[%c0_34, %c0_35, %c0_36], %82 {strides = array<i32>} : memref<1x1x16xf32, #tpu.memory_space<vmem>>, vector<1x1x16xf32>,
    %c0_37 = arith.constant 0 : index
    %c0_38 = arith.constant 0 : index
    %c0_39 = arith.constant 0 : index
    %83 = vector.load %arg10[%c0_37, %c0_38, %c0_39] : memref<1x1x16xf32, #tpu.memory_space<vmem>>, vector<1x1x16xf32>
    %84 = vector.shape_cast %83 : vector<1x1x16xf32> to vector<1x16xf32>
    %cst_40 = arith.constant dense<0xFF800000> : vector<16xf32>
    %85 = vector.multi_reduction <maximumf>, %58, %cst_40 [0] : vector<16x16xf32> to vector<16xf32>
    %86 = vector.shape_cast %85 : vector<16xf32> to vector<1x16xf32>
    %87 = arith.maximumf %84, %86 : vector<1x16xf32>
    %c0_41 = arith.constant 0 : index
    %c0_42 = arith.constant 0 : index
    %c0_43 = arith.constant 0 : index
    %88 = vector.load %arg10[%c0_41, %c0_42, %c0_43] : memref<1x1x16xf32, #tpu.memory_space<vmem>>, vector<1x1x16xf32>
    %89 = vector.shape_cast %88 : vector<1x1x16xf32> to vector<1x16xf32>
    %90 = vector.shape_cast %87 : vector<1x16xf32> to vector<1x1x16xf32>
    tpu.vector_store %arg10[%c0_41, %c0_42, %c0_43], %90 {strides = array<i32>} : memref<1x1x16xf32, #tpu.memory_space<vmem>>, vector<1x1x16xf32>,
    %c0_44 = arith.constant 0 : index
    %c0_45 = arith.constant 0 : index
    %c0_46 = arith.constant 0 : index
    %91 = vector.load %arg11[%c0_44, %c0_45, %c0_46] : memref<1x1x16xf32, #tpu.memory_space<vmem>>, vector<1x1x16xf32>
    %92 = vector.shape_cast %91 : vector<1x1x16xf32> to vector<1x16xf32>
    %cst_47 = arith.constant dense<0x7F800000> : vector<16xf32>
    %93 = vector.multi_reduction <minimumf>, %58, %cst_47 [0] : vector<16x16xf32> to vector<16xf32>
    %94 = vector.shape_cast %93 : vector<16xf32> to vector<1x16xf32>
    %95 = arith.minimumf %92, %94 : vector<1x16xf32>
    %c0_48 = arith.constant 0 : index
    %c0_49 = arith.constant 0 : index
    %c0_50 = arith.constant 0 : index
    %96 = vector.load %arg11[%c0_48, %c0_49, %c0_50] : memref<1x1x16xf32, #tpu.memory_space<vmem>>, vector<1x1x16xf32>
    %97 = vector.shape_cast %96 : vector<1x1x16xf32> to vector<1x16xf32>
    %98 = vector.shape_cast %95 : vector<1x16xf32> to vector<1x1x16xf32>
    tpu.vector_store %arg11[%c0_48, %c0_49, %c0_50], %98 {strides = array<i32>} : memref<1x1x16xf32, #tpu.memory_space<vmem>>, vector<1x1x16xf32>,
    return
  }
  func.func @transform_0(%arg0: i32, %arg1: i32, %arg2: i32) -> (i32, i32, i32, i32) {
    %c2_i32 = arith.constant 2 : i32
    %0 = arith.muli %arg1, %c2_i32 : i32
    %1 = arith.addi %0, %arg2 : i32
    %c0_i32 = arith.constant 0 : i32
    %c0_i32_0 = arith.constant 0 : i32
    %c0_i32_1 = arith.constant 0 : i32
    return %arg0, %1, %c0_i32, %c0_i32_0 : i32, i32, i32, i32
  }
  func.func @transform_1(%arg0: i32, %arg1: i32, %arg2: i32) -> (i32, i32, i32, i32) {
    %c2_i32 = arith.constant 2 : i32
    %0 = arith.muli %arg1, %c2_i32 : i32
    %1 = arith.addi %0, %arg2 : i32
    %c1_i32 = arith.constant 1 : i32
    %2 = arith.addi %1, %c1_i32 : i32
    %c2_i32_0 = arith.constant 2 : i32
    %3 = arith.muli %2, %c2_i32_0 : i32
    %c0_i32 = arith.constant 0 : i32
    %c0_i32_1 = arith.constant 0 : i32
    %c0_i32_2 = arith.constant 0 : i32
    return %arg0, %3, %c0_i32, %c0_i32_1 : i32, i32, i32, i32
  }
  func.func @transform_2(%arg0: i32, %arg1: i32, %arg2: i32) -> (i32, i32) {
    %c0_i32 = arith.constant 0 : i32
    %c0_i32_0 = arith.constant 0 : i32
    %c0_i32_1 = arith.constant 0 : i32
    return %c0_i32, %c0_i32_0 : i32, i32
  }
  func.func @transform_3(%arg0: i32, %arg1: i32, %arg2: i32) -> (i32, i32) {
    %c0_i32 = arith.constant 0 : i32
    %c0_i32_0 = arith.constant 0 : i32
    %c0_i32_1 = arith.constant 0 : i32
    return %c0_i32, %c0_i32_0 : i32, i32
  }
  func.func @transform_4(%arg0: i32, %arg1: i32, %arg2: i32) -> (i32, i32, i32) {
    %c2_i32 = arith.constant 2 : i32
    %0 = arith.muli %arg1, %c2_i32 : i32
    %1 = arith.addi %0, %arg2 : i32
    %c0_i32 = arith.constant 0 : i32
    %c0_i32_0 = arith.constant 0 : i32
    return %arg0, %1, %c0_i32 : i32, i32, i32
  }
  func.func @transform_5(%arg0: i32, %arg1: i32, %arg2: i32) -> (i32, i32, i32) {
    %c2_i32 = arith.constant 2 : i32
    %0 = arith.muli %arg0, %c2_i32 : i32
    %1 = arith.addi %0, %arg1 : i32
    %c0_i32 = arith.constant 0 : i32
    %c0_i32_0 = arith.constant 0 : i32
    %c0_i32_1 = arith.constant 0 : i32
    return %1, %c0_i32, %c0_i32_0 : i32, i32, i32
  }
  func.func @transform_6(%arg0: i32, %arg1: i32, %arg2: i32) -> (i32, i32, i32) {
    %c2_i32 = arith.constant 2 : i32
    %0 = arith.muli %arg0, %c2_i32 : i32
    %1 = arith.addi %0, %arg1 : i32
    %c0_i32 = arith.constant 0 : i32
    %c0_i32_0 = arith.constant 0 : i32
    %c0_i32_1 = arith.constant 0 : i32
    return %1, %c0_i32, %c0_i32_0 : i32, i32, i32
  }
  func.func @transform_7(%arg0: i32, %arg1: i32, %arg2: i32) -> (i32, i32, i32) {
    %c2_i32 = arith.constant 2 : i32
    %0 = arith.muli %arg0, %c2_i32 : i32
    %1 = arith.addi %0, %arg1 : i32
    %c0_i32 = arith.constant 0 : i32
    %c0_i32_0 = arith.constant 0 : i32
    %c0_i32_1 = arith.constant 0 : i32
    return %1, %c0_i32, %c0_i32_0 : i32, i32, i32
  }
  func.func @transform_8(%arg0: i32, %arg1: i32, %arg2: i32) -> (i32, i32, i32) {
    %c2_i32 = arith.constant 2 : i32
    %0 = arith.muli %arg0, %c2_i32 : i32
    %1 = arith.addi %0, %arg1 : i32
    %c0_i32 = arith.constant 0 : i32
    %c0_i32_0 = arith.constant 0 : i32
    %c0_i32_1 = arith.constant 0 : i32
    return %1, %c0_i32, %c0_i32_0 : i32, i32, i32
  }
}

</mosaic_0001>

<llo_original>
// kernel: tpu_custom_call.1
$region0: #{tpu_custom_call.1}
  #allocation0 [shape = 'u32[]', space=smem, size = 0x4, offset = 0x4, fixed_abs, tag = 'smem constant byte address 0x4 - core index']
  #allocation1 [shape = 'u32[144,128]{1,0:T(1,128)}', space=vmem, size = 0x12000, scoped, tag = 'internal scratch']
  %s0 = inlined_call_operand.vmem [shape: bf16[2,18,9,8], index: 0, kind: input, shape index: {}]
  %s1 = inlined_call_operand.vmem [shape: bf16[2,18,9,8], index: 1, kind: input, shape index: {}]
  %s2 = inlined_call_operand.vmem [shape: bf16[64,16], index: 2, kind: input, shape index: {}]
  %s3 = inlined_call_operand.vmem [shape: f32[1,16], index: 3, kind: input, shape index: {}]
  %s4 = inlined_call_operand.vmem [shape: bf16[2,64,16], index: 4, kind: output, shape index: {0}]
  %s5 = inlined_call_operand.hbm [shape: f32[4,1,16], index: 5, kind: output, shape index: {1}]
  %s6 = inlined_call_operand.hbm [shape: f32[4,1,16], index: 6, kind: output, shape index: {2}]
  %s7 = inlined_call_operand.hbm [shape: f32[4,1,16], index: 7, kind: output, shape index: {3}]
  %s8 = inlined_call_operand.hbm [shape: f32[4,1,16], index: 8, kind: output, shape index: {4}]
  %9 = xla_tuple %s4, %s5, %s6, %s7, %s8
  %s10 = sld [smem:[#allocation0]]
  $region85: #{tpu_custom_call.1} parent=0
    _
  %s12 = ssub.s32 1, %s10
  %s13 = scalar_select 0, %s12, %s10
  $region1: #{tpu_custom_call.1} parent=0
    #allocation2 [shape = 'u8[1024]{0}', space=vmem, size = 0x400, scoped, tag = 'output window, operand 1']
    #allocation3 [shape = 's32[2]{0}', space=sflag, size = 0x8, scoped, tag = 'scoped memory for tpu_custom_call.1']
    #allocation4 [shape = 'u8[1024]{0}', space=vmem, size = 0x400, scoped, tag = 'output window, operand 2']
    #allocation5 [shape = 's32[2]{0}', space=sflag, size = 0x8, scoped, tag = 'scoped memory for tpu_custom_call.1']
    #allocation6 [shape = 'u8[1024]{0}', space=vmem, size = 0x400, scoped, tag = 'output window, operand 3']
    #allocation7 [shape = 'u8[1024]{0}', space=vmem, size = 0x400, scoped, tag = 'output window, operand 4']
    #allocation8 [shape = 's32[2]{0}', space=sflag, size = 0x8, scoped, tag = 'scoped memory for tpu_custom_call.1']
    %14 = vsyncpa [#allocation3], 0
    %s15 = scalar_lea.sflag [#allocation3], 1
    %16 = vsyncpa %s15, 0
    %17 = vsyncpa [#allocation5], 0
    %s18 = scalar_lea.sflag [#allocation5], 1
    %19 = vsyncpa %s18, 0
    %20 = vsyncpa [#allocation8], 0
    %s21 = scalar_lea.sflag [#allocation8], 1
    %22 = vsyncpa %s21, 0
    loop: start=0, step=1, limit=10
    $region2: #{tpu_custom_call.1} parent=1 // loop_pre_header
      _
    $region3: #{tpu_custom_call.1} parent=1 // loop_header
      %s24 = sphi 0, %s28
      %p25 = scmp.ge.s32.totalorder %s24, 10
      %s31 = sphi 0, %s50
      %s32 = sphi 0, %s46
      %s33 = sphi 0, %s42
      %s34 = sphi 0, %s31
      %s35 = sphi 0, %s32
      %s36 = sphi 0, %s33
      %s37 = sphi 0, %s34
      %s38 = sphi 0, %s35
      %s39 = sphi 0, %s36
      %s59 = sphi 0, %s61
      %s62 = sphi 0, %s59
      %s63 = sphi 0, %s62
      %s79 = sphi 0, %s63
      %s95 = sphi 0, %s97
      %s98 = sphi 0, %s95
      %s99 = sphi 0, %s98
      %s115 = sphi 0, %s99
      %s119 = sphi 0, %s119
      %s121 = sphi 0, %s119
      %s122 = sphi 0, %s121
      %s136 = sphi 0, %s122
      %s140 = sphi 0, %s140
      %s142 = sphi 0, %s140
      %s143 = sphi 0, %s142
      %s157 = sphi 0, %s143
      %s169 = sphi 0, %s171
      %s172 = sphi 0, %s169
      %s173 = sphi 0, %s172
      %s189 = sphi 0, %s173
      %s199 = sphi 0, %s201
      %s202 = sphi 0, %s199
      %s203 = sphi 0, %s202
      %s219 = sphi 0, %s203
      %s229 = sphi 0, %s231
      %s232 = sphi 0, %s229
      %s233 = sphi 0, %s232
      %s249 = sphi 0, %s233
      %s259 = sphi 0, %s261
      %s262 = sphi 0, %s259
      %s263 = sphi 0, %s262
      %s279 = sphi 0, %s263
      %s289 = sphi 0, %s291
      %s292 = sphi 0, %s289
      %s293 = sphi 0, %s292
      %s309 = sphi 0, %s293
    $region4: #{tpu_custom_call.1} parent=1 // loop_header_branch
      %27 = sbr.rel (%p25) target = $region8
    $region5: #{tpu_custom_call.1} parent=1 // loop_body
      %s29 = ssub.s32 %s24, 1
      %s30 = ssub.s32 %s24, 2
      %s40 = sadd.s32 1, %s33
      %p41 = scmp.ge.s32.totalorder %s40, 2
      %s42 = scalar_select %p41, 0, %s40
      %s43 = sadd.s32 1, %s32
      %s44 = scalar_select %p41, %s43, %s32
      %p45 = scmp.ge.s32.totalorder %s44, 2
      %s46 = scalar_select %p45, 0, %s44
      %s47 = sadd.s32 1, %s31
      %s48 = scalar_select %p45, %s47, %s31
      %p49 = scmp.ge.s32.totalorder %s48, 2
      %s50 = scalar_select %p49, 0, %s48
      %s51 = smul.u32 %s32, 2
      %s52 = sadd.s32 %s51, %s33
      %s53 = smul.u32 %s46, 2
      %s54 = sadd.s32 %s53, %s42
      %s55 = ssub.s32 %s31, %s50
      %s56 = ssub.s32 %s52, %s54
      %s57 = sor.u32 %s55, %s56
      %p58 = scmp.eq.s32.totalorder %s57, 0
      %s60 = sadd.s32 %s59, 1
      %s61 = scalar_select %p58, %s59, %s60
      %p64 = pneg %p58
      %p65 = scmp.eq.s32.totalorder %s24, 7
      %p66 = por %p64, %p65
      %p67 = scmp.ne.s32.totalorder %s59, %s62
      %p68 = scmp.eq.s32.totalorder %s24, 0
      %p69 = por %p67, %p68
      %p70 = scmp.ne.s32.totalorder %s59, %s62
      %p71 = scmp.eq.s32.totalorder %s29, 7
      %p72 = por %p70, %p71
      %p73 = scmp.ne.s32.totalorder %s62, %s63
      %p74 = scmp.eq.s32.totalorder %s29, 0
      %p75 = por %p73, %p74
      %p76 = scmp.ne.s32.totalorder %s62, %s63
      %p77 = scmp.eq.s32.totalorder %s30, 7
      %p78 = por %p76, %p77
      %p80 = scmp.ne.s32.totalorder %s63, %s79
      %p81 = scmp.eq.s32.totalorder %s30, 0
      %p82 = por %p80, %p81
      %s83 = smul.u32 %s32, 2
      %s84 = sadd.s32 %s83, %s33
      %s85 = sadd.s32 %s84, 1
      %s86 = smul.u32 %s85, 2
      %s87 = smul.u32 %s46, 2
      %s88 = sadd.s32 %s87, %s42
      %s89 = sadd.s32 %s88, 1
      %s90 = smul.u32 %s89, 2
      %s91 = ssub.s32 %s31, %s50
      %s92 = ssub.s32 %s86, %s90
      %s93 = sor.u32 %s91, %s92
      %p94 = scmp.eq.s32.totalorder %s93, 0
      %s96 = sadd.s32 %s95, 1
      %s97 = scalar_select %p94, %s95, %s96
      %p100 = pneg %p94
      %p101 = scmp.eq.s32.totalorder %s24, 7
      %p102 = por %p100, %p101
      %p103 = scmp.ne.s32.totalorder %s95, %s98
      %p104 = scmp.eq.s32.totalorder %s24, 0
      %p105 = por %p103, %p104
      %p106 = scmp.ne.s32.totalorder %s95, %s98
      %p107 = scmp.eq.s32.totalorder %s29, 7
      %p108 = por %p106, %p107
      %p109 = scmp.ne.s32.totalorder %s98, %s99
      %p110 = scmp.eq.s32.totalorder %s29, 0
      %p111 = por %p109, %p110
      %p112 = scmp.ne.s32.totalorder %s98, %s99
      %p113 = scmp.eq.s32.totalorder %s30, 7
      %p114 = por %p112, %p113
      %p116 = scmp.ne.s32.totalorder %s99, %s115
      %p117 = scmp.eq.s32.totalorder %s30, 0
      %p118 = por %p116, %p117
      %s120 = sadd.s32 %s119, 1
      %p123 = scmp.eq.s32.totalorder %s24, 7
      %p124 = scmp.ne.s32.totalorder %s119, %s121
      %p125 = scmp.eq.s32.totalorder %s24, 0
      %p126 = por %p124, %p125
      %p127 = scmp.ne.s32.totalorder %s119, %s121
      %p128 = scmp.eq.s32.totalorder %s29, 7
      %p129 = por %p127, %p128
      %p130 = scmp.ne.s32.totalorder %s121, %s122
      %p131 = scmp.eq.s32.totalorder %s29, 0
      %p132 = por %p130, %p131
      %p133 = scmp.ne.s32.totalorder %s121, %s122
      %p134 = scmp.eq.s32.totalorder %s30, 7
      %p135 = por %p133, %p134
      %p137 = scmp.ne.s32.totalorder %s122, %s136
      %p138 = scmp.eq.s32.totalorder %s30, 0
      %p139 = por %p137, %p138
      %s141 = sadd.s32 %s140, 1
      %p144 = scmp.eq.s32.totalorder %s24, 7
      %p145 = scmp.ne.s32.totalorder %s140, %s142
      %p146 = scmp.eq.s32.totalorder %s24, 0
      %p147 = por %p145, %p146
      %p148 = scmp.ne.s32.totalorder %s140, %s142
      %p149 = scmp.eq.s32.totalorder %s29, 7
      %p150 = por %p148, %p149
      %p151 = scmp.ne.s32.totalorder %s142, %s143
      %p152 = scmp.eq.s32.totalorder %s29, 0
      %p153 = por %p151, %p152
      %p154 = scmp.ne.s32.totalorder %s142, %s143
      %p155 = scmp.eq.s32.totalorder %s30, 7
      %p156 = por %p154, %p155
      %p158 = scmp.ne.s32.totalorder %s143, %s157
      %p159 = scmp.eq.s32.totalorder %s30, 0
      %p160 = por %p158, %p159
      %s161 = smul.u32 %s32, 2
      %s162 = sadd.s32 %s161, %s33
      %s163 = smul.u32 %s46, 2
      %s164 = sadd.s32 %s163, %s42
      %s165 = ssub.s32 %s31, %s50
      %s166 = ssub.s32 %s162, %s164
      %s167 = sor.u32 %s165, %s166
      %p168 = scmp.eq.s32.totalorder %s167, 0
      %s170 = sadd.s32 %s169, 1
      %s171 = scalar_select %p168, %s169, %s170
      %p174 = pneg %p168
      %p175 = scmp.eq.s32.totalorder %s24, 7
      %p176 = por %p174, %p175
      %p177 = scmp.ne.s32.totalorder %s169, %s172
      %p178 = scmp.eq.s32.totalorder %s24, 0
      %p179 = por %p177, %p178
      %p180 = scmp.ne.s32.totalorder %s169, %s172
      %p181 = scmp.eq.s32.totalorder %s29, 7
      %p182 = por %p180, %p181
      %p183 = scmp.ne.s32.totalorder %s172, %s173
      %p184 = scmp.eq.s32.totalorder %s29, 0
      %p185 = por %p183, %p184
      %p186 = scmp.ne.s32.totalorder %s172, %s173
      %p187 = scmp.eq.s32.totalorder %s30, 7
      %p188 = por %p186, %p187
      %p190 = scmp.ne.s32.totalorder %s173, %s189
      %p191 = scmp.eq.s32.totalorder %s30, 0
      %p192 = por %p190, %p191
      %s193 = smul.u32 %s31, 2
      %s194 = sadd.s32 %s193, %s32
      %s195 = smul.u32 %s50, 2
      %s196 = sadd.s32 %s195, %s46
      %s197 = ssub.s32 %s194, %s196
      %p198 = scmp.eq.s32.totalorder %s197, 0
      %s200 = sadd.s32 %s199, 1
      %s201 = scalar_select %p198, %s199, %s200
      %p204 = pneg %p198
      %p205 = scmp.eq.s32.totalorder %s24, 7
      %p206 = por %p204, %p205
      %p207 = scmp.ne.s32.totalorder %s199, %s202
      %p208 = scmp.eq.s32.totalorder %s24, 0
      %p209 = por %p207, %p208
      %p210 = scmp.ne.s32.totalorder %s199, %s202
      %p211 = scmp.eq.s32.totalorder %s29, 7
      %p212 = por %p210, %p211
      %p213 = scmp.ne.s32.totalorder %s202, %s203
      %p214 = scmp.eq.s32.totalorder %s29, 0
      %p215 = por %p213, %p214
      %p216 = scmp.ne.s32.totalorder %s202, %s203
      %p217 = scmp.eq.s32.totalorder %s30, 7
      %p218 = por %p216, %p217
      %p220 = scmp.ne.s32.totalorder %s203, %s219
      %p221 = scmp.eq.s32.totalorder %s30, 0
      %p222 = por %p220, %p221
      %s223 = smul.u32 %s31, 2
      %s224 = sadd.s32 %s223, %s32
      %s225 = smul.u32 %s50, 2
      %s226 = sadd.s32 %s225, %s46
      %s227 = ssub.s32 %s224, %s226
      %p228 = scmp.eq.s32.totalorder %s227, 0
      %s230 = sadd.s32 %s229, 1
      %s231 = scalar_select %p228, %s229, %s230
      %p234 = pneg %p228
      %p235 = scmp.eq.s32.totalorder %s24, 7
      %p236 = por %p234, %p235
      %p237 = scmp.ne.s32.totalorder %s229, %s232
      %p238 = scmp.eq.s32.totalorder %s24, 0
      %p239 = por %p237, %p238
      %p240 = scmp.ne.s32.totalorder %s229, %s232
      %p241 = scmp.eq.s32.totalorder %s29, 7
      %p242 = por %p240, %p241
      %p243 = scmp.ne.s32.totalorder %s232, %s233
      %p244 = scmp.eq.s32.totalorder %s29, 0
      %p245 = por %p243, %p244
      %p246 = scmp.ne.s32.totalorder %s232, %s233
      %p247 = scmp.eq.s32.totalorder %s30, 7
      %p248 = por %p246, %p247
      %p250 = scmp.ne.s32.totalorder %s233, %s249
      %p251 = scmp.eq.s32.totalorder %s30, 0
      %p252 = por %p250, %p251
      %s253 = smul.u32 %s31, 2
      %s254 = sadd.s32 %s253, %s32
      %s255 = smul.u32 %s50, 2
      %s256 = sadd.s32 %s255, %s46
      %s257 = ssub.s32 %s254, %s256
      %p258 = scmp.eq.s32.totalorder %s257, 0
      %s260 = sadd.s32 %s259, 1
      %s261 = scalar_select %p258, %s259, %s260
      %p264 = pneg %p258
      %p265 = scmp.eq.s32.totalorder %s24, 7
      %p266 = por %p264, %p265
      %p267 = scmp.ne.s32.totalorder %s259, %s262
      %p268 = scmp.eq.s32.totalorder %s24, 0
      %p269 = por %p267, %p268
      %p270 = scmp.ne.s32.totalorder %s259, %s262
      %p271 = scmp.eq.s32.totalorder %s29, 7
      %p272 = por %p270, %p271
      %p273 = scmp.ne.s32.totalorder %s262, %s263
      %p274 = scmp.eq.s32.totalorder %s29, 0
      %p275 = por %p273, %p274
      %p276 = scmp.ne.s32.totalorder %s262, %s263
      %p277 = scmp.eq.s32.totalorder %s30, 7
      %p278 = por %p276, %p277
      %p280 = scmp.ne.s32.totalorder %s263, %s279
      %p281 = scmp.eq.s32.totalorder %s30, 0
      %p282 = por %p280, %p281
      %s283 = smul.u32 %s31, 2
      %s284 = sadd.s32 %s283, %s32
      %s285 = smul.u32 %s50, 2
      %s286 = sadd.s32 %s285, %s46
      %s287 = ssub.s32 %s284, %s286
      %p288 = scmp.eq.s32.totalorder %s287, 0
      %s290 = sadd.s32 %s289, 1
      %s291 = scalar_select %p288, %s289, %s290
      %p294 = pneg %p288
      %p295 = scmp.eq.s32.totalorder %s24, 7
      %p296 = por %p294, %p295
      %p297 = scmp.ne.s32.totalorder %s289, %s292
      %p298 = scmp.eq.s32.totalorder %s24, 0
      %p299 = por %p297, %p298
      %p300 = scmp.ne.s32.totalorder %s289, %s292
      %p301 = scmp.eq.s32.totalorder %s29, 7
      %p302 = por %p300, %p301
      %p303 = scmp.ne.s32.totalorder %s292, %s293
      %p304 = scmp.eq.s32.totalorder %s29, 0
      %p305 = por %p303, %p304
      %p306 = scmp.ne.s32.totalorder %s292, %s293
      %p307 = scmp.eq.s32.totalorder %s30, 7
      %p308 = por %p306, %p307
      %p310 = scmp.ne.s32.totalorder %s293, %s309
      %p311 = scmp.eq.s32.totalorder %s30, 0
      %p312 = por %p310, %p311
      %p313 = scmp.le.s32.totalorder 1, %s24
      %p314 = scmp.lt.s32.totalorder %s24, 9
      %p315 = pnand %p313, %p314
      %p316 = pneg %p315
      // Predicated region
      $region9: #{tpu_custom_call.1} parent=5 // pred_check
        _
      $region10: #{tpu_custom_call.1} parent=5 // pred_check_branch
        %318 = sbr.rel (%p315) target = $region12
      $region11: #{tpu_custom_call.1} parent=5 // pred_region
        %s319 = ssub.s32 %s24, 1
        // Predicated region
        $region13: #{tpu_custom_call.1} parent=11 // pred_check
          %p320 = pneg %p132
        $region14: #{tpu_custom_call.1} parent=11 // pred_check_branch
          %322 = sbr.rel (%p320) target = $region16
        $region15: #{tpu_custom_call.1} parent=11 // pred_region
          _
        $region16: #{tpu_custom_call.1} parent=11 // pred_fallthru
          _
        // Predicated region
        $region17: #{tpu_custom_call.1} parent=11 // pred_check
          %p323 = pneg %p153
        $region18: #{tpu_custom_call.1} parent=11 // pred_check_branch
          %325 = sbr.rel (%p323) target = $region20
        $region19: #{tpu_custom_call.1} parent=11 // pred_region
          _
        $region20: #{tpu_custom_call.1} parent=11 // pred_fallthru
          _
      $region12: #{tpu_custom_call.1} parent=5 // pred_fallthru
        _
      %p326 = scmp.lt.s32.totalorder %s24, 8
      // Predicated region
      $region21: #{tpu_custom_call.1} parent=5 // pred_check
        %p327 = pneg %p326
      $region22: #{tpu_custom_call.1} parent=5 // pred_check_branch
        %329 = sbr.rel (%p327) target = $region24
      $region23: #{tpu_custom_call.1} parent=5 // pred_region
        // Predicated region
        $region25: #{tpu_custom_call.1} parent=23 // pred_check
          %p330 = pneg %p69
        $region26: #{tpu_custom_call.1} parent=23 // pred_check_branch
          %332 = sbr.rel (%p330) target = $region28
        $region27: #{tpu_custom_call.1} parent=23 // pred_region
          %s333 = smul.u32 %s32, 2
          %s334 = sadd.s32 %s333, %s33
          %s335 = smul.u32 4, %s334
          %s336 = ssub.s32 18, %s335
          %p337 = scmp.lt.s32.totalorder %s336, 4
          %s338 = scalar_select %p337, %s336, 4
          %s339 = smul.u32 64, %s338
          %s340 = smul.u32 %s339, 2
          %p341 = scmp.lt.s32.totalorder %s31, 1
          %s342 = scalar_select %p341, %s31, 1
          %p343 = scmp.lt.s32.totalorder %s335, 17
          %s344 = scalar_select %p343, %s335, 17
          %s345 = smul.addr %s344, 2
          %s346 = smul.addr %s342, 36
          %s347 = sadd.s32 %s345, %s346
          %s348 = smul.addr %s347, 4
          %s349 = scalar_lea.vmem %s0, %s348
          %s350 = smul.u32 %s32, 2
          %s351 = sadd.s32 %s350, %s33
          %s352 = smul.u32 4, %s351
          %s353 = ssub.s32 18, %s352
          %p354 = scmp.lt.s32.totalorder %s353, 4
          %s355 = scalar_select %p354, %s353, 4
          %s356 = smul.u32 64, %s355
          %s357 = smul.u32 %s356, 2
        $region28: #{tpu_custom_call.1} parent=23 // pred_fallthru
          _
        // Predicated region
        $region29: #{tpu_custom_call.1} parent=23 // pred_check
          %p358 = pneg %p105
        $region30: #{tpu_custom_call.1} parent=23 // pred_check_branch
          %360 = sbr.rel (%p358) target = $region32
        $region31: #{tpu_custom_call.1} parent=23 // pred_region
          %s361 = smul.u32 %s32, 2
          %s362 = sadd.s32 %s361, %s33
          %s363 = sadd.s32 %s362, 1
          %s364 = smul.u32 %s363, 2
          %s365 = smul.u32 2, %s364
          %p366 = scmp.lt.s32.totalorder %s31, 1
          %s367 = scalar_select %p366, %s31, 1
          %p368 = scmp.lt.s32.totalorder %s365, 17
          %s369 = scalar_select %p368, %s365, 17
          %s370 = smul.addr %s369, 2
          %s371 = smul.addr %s367, 36
          %s372 = sadd.s32 %s370, %s371
          %s373 = smul.addr %s372, 4
          %s374 = scalar_lea.vmem %s1, %s373
          %s375 = smul.u32 %s32, 2
          %s376 = sadd.s32 %s375, %s33
          %s377 = sadd.s32 %s376, 1
          %s378 = smul.u32 %s377, 2
          %s379 = smul.u32 2, %s378
        $region32: #{tpu_custom_call.1} parent=23 // pred_fallthru
          _
      $region24: #{tpu_custom_call.1} parent=5 // pred_fallthru
        _
      %p380 = scmp.le.s32.totalorder 1, %s24
      %p381 = scmp.lt.s32.totalorder %s24, 9
      %p382 = pnand %p380, %p381
      %p383 = pneg %p382
      // Predicated region
      $region33: #{tpu_custom_call.1} parent=5 // pred_check
        _
      $region34: #{tpu_custom_call.1} parent=5 // pred_check_branch
        %385 = sbr.rel (%p382) target = $region36
      $region35: #{tpu_custom_call.1} parent=5 // pred_region
        %s386 = ssub.s32 %s24, 1
        %s387 = smul.u32 %s35, 2
        %s388 = sadd.s32 %s387, %s36
        %s389 = smul.u32 4, %s388
        %s390 = ssub.s32 18, %s389
        %p391 = scmp.lt.s32.totalorder %s390, 4
        %s392 = scalar_select %p391, %s390, 4
        %s393 = smul.u32 64, %s392
        %s394 = smul.u32 %s393, 2
        %p395 = scmp.lt.s32.totalorder %s34, 1
        %s396 = scalar_select %p395, %s34, 1
        %p397 = scmp.lt.s32.totalorder %s389, 17
        %s398 = scalar_select %p397, %s389, 17
        %s399 = smul.addr %s398, 2
        %s400 = smul.addr %s396, 36
        %s401 = sadd.s32 %s399, %s400
        %s402 = smul.addr %s401, 4
        %s403 = scalar_lea.vmem %s0, %s402
        %p404 = pneg %p75
        %p405 = pneg %p72
        %s406 = smul.u32 %s35, 2
        %s407 = sadd.s32 %s406, %s36
        %s408 = sadd.s32 %s407, 1
        %s409 = smul.u32 %s408, 2
        %s410 = smul.u32 2, %s409
        %p411 = scmp.lt.s32.totalorder %s34, 1
        %s412 = scalar_select %p411, %s34, 1
        %p413 = scmp.lt.s32.totalorder %s410, 17
        %s414 = scalar_select %p413, %s410, 17
        %s415 = smul.addr %s414, 2
        %s416 = smul.addr %s412, 36
        %s417 = sadd.s32 %s415, %s416
        %s418 = smul.addr %s417, 4
        %s419 = scalar_lea.vmem %s1, %s418
        %p420 = pneg %p111
        %p421 = pneg %p108
        %p422 = pneg %p132
        %p423 = pneg %p129
        %p424 = pneg %p153
        %p425 = pneg %p150
        %p426 = pneg %p185
        %p427 = pneg %p182
        %s428 = smul.u32 %s35, 2
        %s429 = sadd.s32 %s428, %s36
        %s430 = smul.u32 2, %s429
        %p431 = scmp.lt.s32.totalorder %s34, 1
        %s432 = scalar_select %p431, %s34, 1
        %p433 = scmp.lt.s32.totalorder %s430, 7
        %s434 = scalar_select %p433, %s430, 7
        %s435 = smul.addr %s432, 8
        %s436 = sadd.s32 %s434, %s435
        %s437 = smul.addr %s436, 4
        %s438 = scalar_lea.vmem %s4, %s437
        %p439 = pneg %p215
        %p440 = pneg %p212
        %s441 = sand.u32 %s202, 1
        %s442 = scalar_lea.sflag [#allocation3], %s441
        %s443 = sand.u32 %s202, 1
        %s444 = scalar_lea.vmem [#allocation2], %s443
        %p445 = pneg %p245
        %p446 = pneg %p242
        %s447 = sand.u32 %s29, 1
        %s448 = scalar_lea.sflag [#allocation5], %s447
        %s449 = sand.u32 %s232, 1
        %s450 = scalar_lea.vmem [#allocation4], %s449
        %p451 = pneg %p275
        %p452 = pneg %p272
        %s453 = sand.u32 %s29, 1
        %s454 = scalar_lea.sflag [#allocation5], %s453
        %s455 = sand.u32 %s262, 1
        %s456 = scalar_lea.vmem [#allocation6], %s455
        %p457 = pneg %p305
        %p458 = pneg %p302
        %s459 = sand.u32 %s292, 1
        %s460 = scalar_lea.sflag [#allocation8], %s459
        %s461 = sand.u32 %s292, 1
        %s462 = scalar_lea.vmem [#allocation7], %s461
        %s463 = smul.u32 %s35, 2
        %s464 = sadd.s32 %s463, %s36
        %s465 = smul.u32 4, %s464
        %s466 = ssub.s32 18, %s465
        %p467 = scmp.lt.s32.totalorder %s466, 4
        %s468 = scalar_select %p467, %s466, 4
        %s469 = smul.u32 64, %s468
        %s470 = smul.u32 %s469, 2
        %p471 = scmp.lt.s32.totalorder %s34, 1
        %s472 = scalar_select %p471, %s34, 1
        %p473 = scmp.lt.s32.totalorder %s465, 17
        %s474 = scalar_select %p473, %s465, 17
        %s475 = smul.addr %s474, 2
        %s476 = smul.addr %s472, 36
        %s477 = sadd.s32 %s475, %s476
        %s478 = smul.addr %s477, 4
        %s479 = scalar_lea.vmem %s0, %s478
        %s480 = smul.u32 %s35, 2
        %s481 = sadd.s32 %s480, %s36
        %s482 = smul.u32 4, %s481
        %s483 = ssub.s32 18, %s482
        %p484 = scmp.lt.s32.totalorder %s483, 4
        %s485 = scalar_select %p484, %s483, 4
        %s486 = smul.u32 64, %s485
        %s487 = smul.u32 %s486, 2
        %s488 = smul.u32 %s35, 2
        %s489 = sadd.s32 %s488, %s36
        %s490 = sadd.s32 %s489, 1
        %s491 = smul.u32 %s490, 2
        %s492 = smul.u32 2, %s491
        %p493 = scmp.lt.s32.totalorder %s34, 1
        %s494 = scalar_select %p493, %s34, 1
        %p495 = scmp.lt.s32.totalorder %s492, 17
        %s496 = scalar_select %p495, %s492, 17
        %s497 = smul.addr %s496, 2
        %s498 = smul.addr %s494, 36
        %s499 = sadd.s32 %s497, %s498
        %s500 = smul.addr %s499, 4
        %s501 = scalar_lea.vmem %s1, %s500
        %s502 = smul.u32 %s35, 2
        %s503 = sadd.s32 %s502, %s36
        %s504 = sadd.s32 %s503, 1
        %s505 = smul.u32 %s504, 2
        %s506 = smul.u32 2, %s505
        %s507 = smul.u32 %s35, 2
        %s508 = sadd.s32 %s507, %s36
        %s509 = smul.u32 2, %s508
        %p510 = scmp.lt.s32.totalorder %s34, 1
        %s511 = scalar_select %p510, %s34, 1
        %p512 = scmp.lt.s32.totalorder %s509, 7
        %s513 = scalar_select %p512, %s509, 7
        %s514 = smul.addr %s511, 8
        %s515 = sadd.s32 %s513, %s514
        %s516 = smul.addr %s515, 4
        %s517 = scalar_lea.vmem %s4, %s516
        %s518 = smul.u32 %s35, 2
        %s519 = sadd.s32 %s518, %s36
        %s520 = smul.u32 2, %s519
        %s521 = smul.u32 %s34, 2
        %s522 = sadd.s32 %s521, %s35
        %s523 = smul.u32 %s34, 2
        %s524 = sadd.s32 %s523, %s35
        %s525 = smul.u32 %s34, 2
        %s526 = sadd.s32 %s525, %s35
        %s527 = smul.u32 %s34, 2
        %s528 = sadd.s32 %s527, %s35
        %v530 = vld [vmem:[%s479] sm:$0xf]
        %v531 = vld [vmem:[%s479 + $0x4] sm:$0x1]
        %v532 = vld [vmem:[%s479 + $0x8] sm:$0xf]
        %v533 = vld [vmem:[%s479 + $0xc] sm:$0x1]
        %v534 = vld [vmem:[%s479 + $0x10] sm:$0xf]
        %v535 = vld [vmem:[%s479 + $0x14] sm:$0x1]
        %v536 = vld [vmem:[%s479 + $0x18] sm:$0xf]
        %v537 = vld [vmem:[%s479 + $0x1c] sm:$0x1]
        %v538 = vld [vmem:[%s501] sm:$0xf]
        %v539 = vld [vmem:[%s501 + $0x4] sm:$0x1]
        %v540 = vld [vmem:[%s501 + $0x8] sm:$0xf]
        %v541 = vld [vmem:[%s501 + $0xc] sm:$0x1]
        %v542 = vld [vmem:[%s2] sm:$0xf]
        %v543 = vld [vmem:[%s2 + $0x4] sm:$0xf]
        %v544 = vld [vmem:[%s2 + $0x8] sm:$0xf]
        %v545 = vld [vmem:[%s2 + $0xc] sm:$0xf]
        %v546 = vld [vmem:[%s2 + $0x10] sm:$0xf]
        %v547 = vld [vmem:[%s2 + $0x14] sm:$0xf]
        %v548 = vld [vmem:[%s2 + $0x18] sm:$0xf]
        %v549 = vld [vmem:[%s2 + $0x1c] sm:$0xf]
        %vm550 = vsmask.f32 3328
        %vm551 = vsmask.f32 7440
        %vm552 = vmor %vm550, %vm551
        %v554 = vshrl.u32 %v530, 16
        %v556 = vrot.slane %v554, 4
        %v557 = vshll.u32 %v530, 16
        %v559 = vrot.slane %v557, 5
        %v560 = vor.u32 %v556, %v559
        %v561 = vrot.slane %v560, 4
        %v563 = vshll.u32 %v531, 16
        %v565 = vrot.slane %v563, 5
        %v566 = vsel %vm552, %v561, %v565
        %v568 = vshrl.u32 %v534, 16
        %v570 = vrot.slane %v568, 4
        %v571 = vshll.u32 %v534, 16
        %v573 = vrot.slane %v571, 5
        %v574 = vor.u32 %v570, %v573
        %v575 = vrot.slane %v574, 4
        %v577 = vshll.u32 %v535, 16
        %v579 = vrot.slane %v577, 5
        %v580 = vsel %vm552, %v575, %v579
        %v581 = vunpack.c.l.b16 %v566
        %v582 = vunpack.c.l.b16 %v580
        %v583 = vpack.c.b16 %v582, %v581
        %vm584 = vcmask 64512
        %v586 = vsel %vm584, %v583, 0
        %vm588 = vcmask 1043456
        %v590 = vsel %vm588, %v543, 0
        %592 = vmatprep.subr.bf16.mxu0 0
        %593 = vmatpush1.bf16.msra.mxu0 0
        %594 = vmatprep.subr.bf16.mxu0 0
        %595 = vmatpush1.bf16.msra.mxu0 0
        %596 = vmatprep.subr.bf16.mxu0 0
        %597 = vmatpush1.bf16.msra.mxu0 0
        %598 = vmatprep.subr.bf16.mxu0 0
        %599 = vmatpush1.bf16.msra.mxu0 0
        %600 = vmatprep.subr.bf16.mxu0 0
        %601 = vmatpush1.bf16.msra.mxu0 0
        %602 = vmatprep.subr.bf16.mxu0 0
        %603 = vmatpush1.bf16.msra.mxu0 0
        %604 = vmatprep.subr.bf16.mxu0 0
        %605 = vmatpush1.bf16.msra.mxu0 0
        %606 = vmatprep.subr.bf16.mxu0 0
        %607 = vmatpush1.bf16.msra.mxu0 %v590
        %608 = vmatprep.subr.bf16.mxu0 0
        %609 = vmatpush2.bf16.msra.mxu0 0
        %610 = vmatprep.subr.bf16.mxu0 0
        %611 = vmatpush2.bf16.msra.mxu0 0
        %612 = vmatprep.subr.bf16.mxu0 0
        %613 = vmatpush2.bf16.msra.mxu0 0
        %614 = vmatprep.subr.bf16.mxu0 0
        %615 = vmatpush2.bf16.msra.mxu0 0
        %616 = vmatprep.subr.bf16.mxu0 0
        %617 = vmatpush2.bf16.msra.mxu0 0
        %618 = vmatprep.subr.bf16.mxu0 0
        %619 = vmatpush2.bf16.msra.mxu0 0
        %620 = vmatprep.subr.bf16.mxu0 0
        %621 = vmatpush2.bf16.msra.mxu0 0
        %622 = vmatprep.subr.bf16.mxu0 0
        %623 = vmatpush2.bf16.msra.mxu0 0
        %624 = vmatprep.mubr.bf16.mxu0 0
        %625 = vmatmul.mubr.bf16.gmra.mxu0 %v586
        %v626 = vpop.f32.mrf.mxu0
        %v627 = vadd.f32 0.0, %v626
        %v628 = vpop.f32.mrf.mxu0
        %v629 = vpop.f32.mrf.mxu0
        %v630 = vadd.f32 0.0, %v629
        %v631 = vpop.f32.mrf.mxu0
        %632 = vdwg.mxu0
        %v635 = vunpack.c.l.b16 %v530
        %v636 = vunpack.c.l.b16 %v534
        %v637 = vpack.c.b16 %v636, %v635
        %v639 = vsel %vm584, %v637, 0
        %v642 = vsel %vm588, %v542, 0
        %644 = vmatprep.subr.bf16.mxu0 0
        %645 = vmatpush1.bf16.msra.mxu0 0
        %646 = vmatprep.subr.bf16.mxu0 0
        %647 = vmatpush1.bf16.msra.mxu0 0
        %648 = vmatprep.subr.bf16.mxu0 0
        %649 = vmatpush1.bf16.msra.mxu0 0
        %650 = vmatprep.subr.bf16.mxu0 0
        %651 = vmatpush1.bf16.msra.mxu0 0
        %652 = vmatprep.subr.bf16.mxu0 0
        %653 = vmatpush1.bf16.msra.mxu0 0
        %654 = vmatprep.subr.bf16.mxu0 0
        %655 = vmatpush1.bf16.msra.mxu0 0
        %656 = vmatprep.subr.bf16.mxu0 0
        %657 = vmatpush1.bf16.msra.mxu0 0
        %658 = vmatprep.subr.bf16.mxu0 0
        %659 = vmatpush1.bf16.msra.mxu0 %v642
        %660 = vmatprep.subr.bf16.mxu0 0
        %661 = vmatpush2.bf16.msra.mxu0 0
        %662 = vmatprep.subr.bf16.mxu0 0
        %663 = vmatpush2.bf16.msra.mxu0 0
        %664 = vmatprep.subr.bf16.mxu0 0
        %665 = vmatpush2.bf16.msra.mxu0 0
        %666 = vmatprep.subr.bf16.mxu0 0
        %667 = vmatpush2.bf16.msra.mxu0 0
        %668 = vmatprep.subr.bf16.mxu0 0
        %669 = vmatpush2.bf16.msra.mxu0 0
        %670 = vmatprep.subr.bf16.mxu0 0
        %671 = vmatpush2.bf16.msra.mxu0 0
        %672 = vmatprep.subr.bf16.mxu0 0
        %673 = vmatpush2.bf16.msra.mxu0 0
        %674 = vmatprep.subr.bf16.mxu0 0
        %675 = vmatpush2.bf16.msra.mxu0 0
        %676 = vmatprep.mubr.bf16.mxu0 0
        %677 = vmatmul.mubr.bf16.gmra.mxu0 %v639
        %v678 = vpop.f32.mrf.mxu0
        %v679 = vadd.f32 %v627, %v678
        %v680 = vpop.f32.mrf.mxu0
        %v681 = vpop.f32.mrf.mxu0
        %v682 = vadd.f32 %v630, %v681
        %v683 = vpop.f32.mrf.mxu0
        %684 = vdwg.mxu0
        %v687 = vunpack.c.l.b16 %v532
        %v688 = vunpack.c.l.b16 %v536
        %v689 = vpack.c.b16 %v688, %v687
        %v691 = vsel %vm584, %v689, 0
        %v694 = vsel %vm588, %v544, 0
        %696 = vmatprep.subr.bf16.mxu0 0
        %697 = vmatpush1.bf16.msra.mxu0 0
        %698 = vmatprep.subr.bf16.mxu0 0
        %699 = vmatpush1.bf16.msra.mxu0 0
        %700 = vmatprep.subr.bf16.mxu0 0
        %701 = vmatpush1.bf16.msra.mxu0 0
        %702 = vmatprep.subr.bf16.mxu0 0
        %703 = vmatpush1.bf16.msra.mxu0 0
        %704 = vmatprep.subr.bf16.mxu0 0
        %705 = vmatpush1.bf16.msra.mxu0 0
        %706 = vmatprep.subr.bf16.mxu0 0
        %707 = vmatpush1.bf16.msra.mxu0 0
        %708 = vmatprep.subr.bf16.mxu0 0
        %709 = vmatpush1.bf16.msra.mxu0 0
        %710 = vmatprep.subr.bf16.mxu0 0
        %711 = vmatpush1.bf16.msra.mxu0 %v694
        %712 = vmatprep.subr.bf16.mxu0 0
        %713 = vmatpush2.bf16.msra.mxu0 0
        %714 = vmatprep.subr.bf16.mxu0 0
        %715 = vmatpush2.bf16.msra.mxu0 0
        %716 = vmatprep.subr.bf16.mxu0 0
        %717 = vmatpush2.bf16.msra.mxu0 0
        %718 = vmatprep.subr.bf16.mxu0 0
        %719 = vmatpush2.bf16.msra.mxu0 0
        %720 = vmatprep.subr.bf16.mxu0 0
        %721 = vmatpush2.bf16.msra.mxu0 0
        %722 = vmatprep.subr.bf16.mxu0 0
        %723 = vmatpush2.bf16.msra.mxu0 0
        %724 = vmatprep.subr.bf16.mxu0 0
        %725 = vmatpush2.bf16.msra.mxu0 0
        %726 = vmatprep.subr.bf16.mxu0 0
        %727 = vmatpush2.bf16.msra.mxu0 0
        %728 = vmatprep.mubr.bf16.mxu0 0
        %729 = vmatmul.mubr.bf16.gmra.mxu0 %v691
        %v730 = vpop.f32.mrf.mxu0
        %v731 = vadd.f32 0.0, %v730
        %v732 = vpop.f32.mrf.mxu0
        %v733 = vpop.f32.mrf.mxu0
        %v734 = vadd.f32 0.0, %v733
        %v735 = vpop.f32.mrf.mxu0
        %736 = vdwg.mxu0
        %v737 = vadd.f32 %v679, %v731
        %v738 = vadd.f32 %v682, %v734
        %v740 = vshrl.u32 %v532, 16
        %v742 = vrot.slane %v740, 4
        %v743 = vshll.u32 %v532, 16
        %v745 = vrot.slane %v743, 5
        %v746 = vor.u32 %v742, %v745
        %v747 = vrot.slane %v746, 4
        %v749 = vshll.u32 %v533, 16
        %v751 = vrot.slane %v749, 5
        %v752 = vsel %vm552, %v747, %v751
        %v754 = vshrl.u32 %v536, 16
        %v756 = vrot.slane %v754, 4
        %v757 = vshll.u32 %v536, 16
        %v759 = vrot.slane %v757, 5
        %v760 = vor.u32 %v756, %v759
        %v761 = vrot.slane %v760, 4
        %v763 = vshll.u32 %v537, 16
        %v765 = vrot.slane %v763, 5
        %v766 = vsel %vm552, %v761, %v765
        %v767 = vunpack.c.l.b16 %v752
        %v768 = vunpack.c.l.b16 %v766
        %v769 = vpack.c.b16 %v768, %v767
        %v771 = vsel %vm584, %v769, 0
        %v774 = vsel %vm588, %v545, 0
        %776 = vmatprep.subr.bf16.mxu0 0
        %777 = vmatpush1.bf16.msra.mxu0 0
        %778 = vmatprep.subr.bf16.mxu0 0
        %779 = vmatpush1.bf16.msra.mxu0 0
        %780 = vmatprep.subr.bf16.mxu0 0
        %781 = vmatpush1.bf16.msra.mxu0 0
        %782 = vmatprep.subr.bf16.mxu0 0
        %783 = vmatpush1.bf16.msra.mxu0 0
        %784 = vmatprep.subr.bf16.mxu0 0
        %785 = vmatpush1.bf16.msra.mxu0 0
        %786 = vmatprep.subr.bf16.mxu0 0
        %787 = vmatpush1.bf16.msra.mxu0 0
        %788 = vmatprep.subr.bf16.mxu0 0
        %789 = vmatpush1.bf16.msra.mxu0 0
        %790 = vmatprep.subr.bf16.mxu0 0
        %791 = vmatpush1.bf16.msra.mxu0 %v774
        %792 = vmatprep.subr.bf16.mxu0 0
        %793 = vmatpush2.bf16.msra.mxu0 0
        %794 = vmatprep.subr.bf16.mxu0 0
        %795 = vmatpush2.bf16.msra.mxu0 0
        %796 = vmatprep.subr.bf16.mxu0 0
        %797 = vmatpush2.bf16.msra.mxu0 0
        %798 = vmatprep.subr.bf16.mxu0 0
        %799 = vmatpush2.bf16.msra.mxu0 0
        %800 = vmatprep.subr.bf16.mxu0 0
        %801 = vmatpush2.bf16.msra.mxu0 0
        %802 = vmatprep.subr.bf16.mxu0 0
        %803 = vmatpush2.bf16.msra.mxu0 0
        %804 = vmatprep.subr.bf16.mxu0 0
        %805 = vmatpush2.bf16.msra.mxu0 0
        %806 = vmatprep.subr.bf16.mxu0 0
        %807 = vmatpush2.bf16.msra.mxu0 0
        %808 = vmatprep.mubr.bf16.mxu0 0
        %809 = vmatmul.mubr.bf16.gmra.mxu0 %v771
        %v810 = vpop.f32.mrf.mxu0
        %v811 = vadd.f32 0.0, %v810
        %v812 = vpop.f32.mrf.mxu0
        %v813 = vpop.f32.mrf.mxu0
        %v814 = vadd.f32 0.0, %v813
        %v815 = vpop.f32.mrf.mxu0
        %816 = vdwg.mxu0
        %v817 = vadd.f32 %v737, %v811
        %v818 = vadd.f32 %v738, %v814
        %v820 = vunpack.c.l.b16 %v538
        %v821 = vpack.c.b16 %v820, %v636
        %v823 = vsel %vm584, %v821, 0
        %v826 = vsel %vm588, %v546, 0
        %828 = vmatprep.subr.bf16.mxu0 0
        %829 = vmatpush1.bf16.msra.mxu0 0
        %830 = vmatprep.subr.bf16.mxu0 0
        %831 = vmatpush1.bf16.msra.mxu0 0
        %832 = vmatprep.subr.bf16.mxu0 0
        %833 = vmatpush1.bf16.msra.mxu0 0
        %834 = vmatprep.subr.bf16.mxu0 0
        %835 = vmatpush1.bf16.msra.mxu0 0
        %836 = vmatprep.subr.bf16.mxu0 0
        %837 = vmatpush1.bf16.msra.mxu0 0
        %838 = vmatprep.subr.bf16.mxu0 0
        %839 = vmatpush1.bf16.msra.mxu0 0
        %840 = vmatprep.subr.bf16.mxu0 0
        %841 = vmatpush1.bf16.msra.mxu0 0
        %842 = vmatprep.subr.bf16.mxu0 0
        %843 = vmatpush1.bf16.msra.mxu0 %v826
        %844 = vmatprep.subr.bf16.mxu0 0
        %845 = vmatpush2.bf16.msra.mxu0 0
        %846 = vmatprep.subr.bf16.mxu0 0
        %847 = vmatpush2.bf16.msra.mxu0 0
        %848 = vmatprep.subr.bf16.mxu0 0
        %849 = vmatpush2.bf16.msra.mxu0 0
        %850 = vmatprep.subr.bf16.mxu0 0
        %851 = vmatpush2.bf16.msra.mxu0 0
        %852 = vmatprep.subr.bf16.mxu0 0
        %853 = vmatpush2.bf16.msra.mxu0 0
        %854 = vmatprep.subr.bf16.mxu0 0
        %855 = vmatpush2.bf16.msra.mxu0 0
        %856 = vmatprep.subr.bf16.mxu0 0
        %857 = vmatpush2.bf16.msra.mxu0 0
        %858 = vmatprep.subr.bf16.mxu0 0
        %859 = vmatpush2.bf16.msra.mxu0 0
        %860 = vmatprep.mubr.bf16.mxu0 0
        %861 = vmatmul.mubr.bf16.gmra.mxu0 %v823
        %v862 = vpop.f32.mrf.mxu0
        %v863 = vadd.f32 0.0, %v862
        %v864 = vpop.f32.mrf.mxu0
        %v865 = vpop.f32.mrf.mxu0
        %v866 = vadd.f32 0.0, %v865
        %v867 = vpop.f32.mrf.mxu0
        %868 = vdwg.mxu0
        %v869 = vadd.f32 %v817, %v863
        %v870 = vadd.f32 %v818, %v866
        %v872 = vshrl.u32 %v538, 16
        %v874 = vrot.slane %v872, 4
        %v875 = vshll.u32 %v538, 16
        %v877 = vrot.slane %v875, 5
        %v878 = vor.u32 %v874, %v877
        %v879 = vrot.slane %v878, 4
        %v881 = vshll.u32 %v539, 16
        %v883 = vrot.slane %v881, 5
        %v884 = vsel %vm552, %v879, %v883
        %v885 = vunpack.c.l.b16 %v884
        %v886 = vpack.c.b16 %v885, %v582
        %v888 = vsel %vm584, %v886, 0
        %v891 = vsel %vm588, %v547, 0
        %893 = vmatprep.subr.bf16.mxu0 0
        %894 = vmatpush1.bf16.msra.mxu0 0
        %895 = vmatprep.subr.bf16.mxu0 0
        %896 = vmatpush1.bf16.msra.mxu0 0
        %897 = vmatprep.subr.bf16.mxu0 0
        %898 = vmatpush1.bf16.msra.mxu0 0
        %899 = vmatprep.subr.bf16.mxu0 0
        %900 = vmatpush1.bf16.msra.mxu0 0
        %901 = vmatprep.subr.bf16.mxu0 0
        %902 = vmatpush1.bf16.msra.mxu0 0
        %903 = vmatprep.subr.bf16.mxu0 0
        %904 = vmatpush1.bf16.msra.mxu0 0
        %905 = vmatprep.subr.bf16.mxu0 0
        %906 = vmatpush1.bf16.msra.mxu0 0
        %907 = vmatprep.subr.bf16.mxu0 0
        %908 = vmatpush1.bf16.msra.mxu0 %v891
        %909 = vmatprep.subr.bf16.mxu0 0
        %910 = vmatpush2.bf16.msra.mxu0 0
        %911 = vmatprep.subr.bf16.mxu0 0
        %912 = vmatpush2.bf16.msra.mxu0 0
        %913 = vmatprep.subr.bf16.mxu0 0
        %914 = vmatpush2.bf16.msra.mxu0 0
        %915 = vmatprep.subr.bf16.mxu0 0
        %916 = vmatpush2.bf16.msra.mxu0 0
        %917 = vmatprep.subr.bf16.mxu0 0
        %918 = vmatpush2.bf16.msra.mxu0 0
        %919 = vmatprep.subr.bf16.mxu0 0
        %920 = vmatpush2.bf16.msra.mxu0 0
        %921 = vmatprep.subr.bf16.mxu0 0
        %922 = vmatpush2.bf16.msra.mxu0 0
        %923 = vmatprep.subr.bf16.mxu0 0
        %924 = vmatpush2.bf16.msra.mxu0 0
        %925 = vmatprep.mubr.bf16.mxu0 0
        %926 = vmatmul.mubr.bf16.gmra.mxu0 %v888
        %v927 = vpop.f32.mrf.mxu0
        %v928 = vadd.f32 0.0, %v927
        %v929 = vpop.f32.mrf.mxu0
        %v930 = vpop.f32.mrf.mxu0
        %v931 = vadd.f32 0.0, %v930
        %v932 = vpop.f32.mrf.mxu0
        %933 = vdwg.mxu0
        %v934 = vadd.f32 %v869, %v928
        %v935 = vadd.f32 %v870, %v931
        %v937 = vunpack.c.l.b16 %v540
        %v938 = vpack.c.b16 %v937, %v688
        %v940 = vsel %vm584, %v938, 0
        %v943 = vsel %vm588, %v548, 0
        %945 = vmatprep.subr.bf16.mxu0 0
        %946 = vmatpush1.bf16.msra.mxu0 0
        %947 = vmatprep.subr.bf16.mxu0 0
        %948 = vmatpush1.bf16.msra.mxu0 0
        %949 = vmatprep.subr.bf16.mxu0 0
        %950 = vmatpush1.bf16.msra.mxu0 0
        %951 = vmatprep.subr.bf16.mxu0 0
        %952 = vmatpush1.bf16.msra.mxu0 0
        %953 = vmatprep.subr.bf16.mxu0 0
        %954 = vmatpush1.bf16.msra.mxu0 0
        %955 = vmatprep.subr.bf16.mxu0 0
        %956 = vmatpush1.bf16.msra.mxu0 0
        %957 = vmatprep.subr.bf16.mxu0 0
        %958 = vmatpush1.bf16.msra.mxu0 0
        %959 = vmatprep.subr.bf16.mxu0 0
        %960 = vmatpush1.bf16.msra.mxu0 %v943
        %961 = vmatprep.subr.bf16.mxu0 0
        %962 = vmatpush2.bf16.msra.mxu0 0
        %963 = vmatprep.subr.bf16.mxu0 0
        %964 = vmatpush2.bf16.msra.mxu0 0
        %965 = vmatprep.subr.bf16.mxu0 0
        %966 = vmatpush2.bf16.msra.mxu0 0
        %967 = vmatprep.subr.bf16.mxu0 0
        %968 = vmatpush2.bf16.msra.mxu0 0
        %969 = vmatprep.subr.bf16.mxu0 0
        %970 = vmatpush2.bf16.msra.mxu0 0
        %971 = vmatprep.subr.bf16.mxu0 0
        %972 = vmatpush2.bf16.msra.mxu0 0
        %973 = vmatprep.subr.bf16.mxu0 0
        %974 = vmatpush2.bf16.msra.mxu0 0
        %975 = vmatprep.subr.bf16.mxu0 0
        %976 = vmatpush2.bf16.msra.mxu0 0
        %977 = vmatprep.mubr.bf16.mxu0 0
        %978 = vmatmul.mubr.bf16.gmra.mxu0 %v940
        %v979 = vpop.f32.mrf.mxu0
        %v980 = vadd.f32 0.0, %v979
        %v981 = vpop.f32.mrf.mxu0
        %v982 = vpop.f32.mrf.mxu0
        %v983 = vadd.f32 0.0, %v982
        %v984 = vpop.f32.mrf.mxu0
        %985 = vdwg.mxu0
        %v986 = vadd.f32 %v934, %v980
        %v987 = vadd.f32 %v935, %v983
        %v989 = vshrl.u32 %v540, 16
        %v991 = vrot.slane %v989, 4
        %v992 = vshll.u32 %v540, 16
        %v994 = vrot.slane %v992, 5
        %v995 = vor.u32 %v991, %v994
        %v996 = vrot.slane %v995, 4
        %v998 = vshll.u32 %v541, 16
        %v1000 = vrot.slane %v998, 5
        %v1001 = vsel %vm552, %v996, %v1000
        %v1002 = vunpack.c.l.b16 %v1001
        %v1003 = vpack.c.b16 %v1002, %v768
        %v1005 = vsel %vm584, %v1003, 0
        %v1008 = vsel %vm588, %v549, 0
        %1010 = vmatprep.subr.bf16.mxu0 0
        %1011 = vmatpush1.bf16.msra.mxu0 0
        %1012 = vmatprep.subr.bf16.mxu0 0
        %1013 = vmatpush1.bf16.msra.mxu0 0
        %1014 = vmatprep.subr.bf16.mxu0 0
        %1015 = vmatpush1.bf16.msra.mxu0 0
        %1016 = vmatprep.subr.bf16.mxu0 0
        %1017 = vmatpush1.bf16.msra.mxu0 0
        %1018 = vmatprep.subr.bf16.mxu0 0
        %1019 = vmatpush1.bf16.msra.mxu0 0
        %1020 = vmatprep.subr.bf16.mxu0 0
        %1021 = vmatpush1.bf16.msra.mxu0 0
        %1022 = vmatprep.subr.bf16.mxu0 0
        %1023 = vmatpush1.bf16.msra.mxu0 0
        %1024 = vmatprep.subr.bf16.mxu0 0
        %1025 = vmatpush1.bf16.msra.mxu0 %v1008
        %1026 = vmatprep.subr.bf16.mxu0 0
        %1027 = vmatpush2.bf16.msra.mxu0 0
        %1028 = vmatprep.subr.bf16.mxu0 0
        %1029 = vmatpush2.bf16.msra.mxu0 0
        %1030 = vmatprep.subr.bf16.mxu0 0
        %1031 = vmatpush2.bf16.msra.mxu0 0
        %1032 = vmatprep.subr.bf16.mxu0 0
        %1033 = vmatpush2.bf16.msra.mxu0 0
        %1034 = vmatprep.subr.bf16.mxu0 0
        %1035 = vmatpush2.bf16.msra.mxu0 0
        %1036 = vmatprep.subr.bf16.mxu0 0
        %1037 = vmatpush2.bf16.msra.mxu0 0
        %1038 = vmatprep.subr.bf16.mxu0 0
        %1039 = vmatpush2.bf16.msra.mxu0 0
        %1040 = vmatprep.subr.bf16.mxu0 0
        %1041 = vmatpush2.bf16.msra.mxu0 0
        %1042 = vmatprep.mubr.bf16.mxu0 0
        %1043 = vmatmul.mubr.bf16.gmra.mxu0 %v1005
        %v1044 = vpop.f32.mrf.mxu0
        %v1045 = vadd.f32 0.0, %v1044
        %v1046 = vpop.f32.mrf.mxu0
        %v1047 = vpop.f32.mrf.mxu0
        %v1048 = vadd.f32 0.0, %v1047
        %v1049 = vpop.f32.mrf.mxu0
        %1050 = vdwg.mxu0
        %v1051 = vadd.f32 %v986, %v1045
        %v1052 = vadd.f32 %v987, %v1048
        %v1053 = vld [vmem:[%s3] sm:$0x1]
        %v1055 = vlaneseq
        %v1056 = vshrl.u32 %v1055, 7
        %v1057 = vsub.s32 0, %v1056
        %v1058 = vrot.slane %v1053, %v1057
        %v1060 = vadd.f32 %v1051, %v1058
        %v1061 = vadd.f32 %v1052, %v1058
        %v1062 = vpack.c.bf16 %v1061, %v1060
        %v1064 = vunpack.c.l.b16 %v1062
        %v1065 = vunpack.c.h.b16 %v1062
        %v1066 = vpack.c.b16 %v1064, %v1064
        %v1067 = vpack.c.b16 %v1065, %v1065
        %vm1070 = vcmask 125952
        %1071 = vst.msk [vmem:[%s517] sm:$0xf] %vm1070, %v1066
        %1072 = vst.msk [vmem:[%s517 + $0x4] sm:$0xf] %vm1070, %v1067
        %p1073 = scmp.eq.s32.totalorder %s36, 0
        // Predicated region
        $region37: #{tpu_custom_call.1} parent=35 // pred_check
          %p1074 = pneg %p1073
        $region38: #{tpu_custom_call.1} parent=35 // pred_check_branch
          %1076 = sbr.rel (%p1074) target = $region40
        $region39: #{tpu_custom_call.1} parent=35 // pred_region
          %vm1077 = vcmask 122880
          %1078 = vst.msk [vmem:[%s444] sm:$0x1] %vm1077, 0.0
          %1079 = vst.msk [vmem:[%s450] sm:$0x1] %vm1077, 0.0
          %1080 = vst.msk [vmem:[%s456] sm:$0x1] %vm1077, -inf
          %1081 = vst.msk [vmem:[%s462] sm:$0x1] %vm1077, inf
        $region40: #{tpu_custom_call.1} parent=35 // pred_fallthru
          _
        %v1082 = vld [vmem:[%s444] sm:$0x1]
        %vm1083 = vcmask 130048
        %v1084 = vsel %vm1083, %v1060, 0.0
        %v1085 = vsel %vm1083, %v1061, 0.0
        %v1086 = vadd.f32 %v1084, %v1085
        %v1087 = vrot.slane %v1086, 4
        %v1088 = vadd.f32 %v1086, %v1087
        %v1089 = vrot.slane %v1088, 2
        %v1090 = vadd.f32 %v1088, %v1089
        %v1091 = vrot.slane %v1090, 1
        %v1092 = vadd.f32 %v1090, %v1091
        %v1093 = vadd.f32 %v1082, %v1092
        %vm1094 = vcmask 122880
        %1095 = vst.msk [vmem:[%s444] sm:$0x1] %vm1094, %v1093
        %v1096 = vld [vmem:[%s450] sm:$0x1]
        %v1097 = vmul.f32 %v1060, %v1060
        %v1098 = vmul.f32 %v1061, %v1061
        %v1099 = vsel %vm1083, %v1097, 0.0
        %v1100 = vsel %vm1083, %v1098, 0.0
        %v1101 = vadd.f32 %v1099, %v1100
        %v1102 = vrot.slane %v1101, 4
        %v1103 = vadd.f32 %v1101, %v1102
        %v1104 = vrot.slane %v1103, 2
        %v1105 = vadd.f32 %v1103, %v1104
        %v1106 = vrot.slane %v1105, 1
        %v1107 = vadd.f32 %v1105, %v1106
        %v1108 = vadd.f32 %v1096, %v1107
        %1109 = vst.msk [vmem:[%s450] sm:$0x1] %vm1094, %v1108
        %v1110 = vld [vmem:[%s456] sm:$0x1]
        %v1111 = vsel %vm1083, %v1060, -inf
        %v1112 = vsel %vm1083, %v1061, -inf
        %v1113 = vmax.f32 %v1111, %v1112
        %v1114 = vrot.slane %v1113, 4
        %v1115 = vmax.f32 %v1113, %v1114
        %v1116 = vrot.slane %v1115, 2
        %v1117 = vmax.f32 %v1115, %v1116
        %v1118 = vrot.slane %v1117, 1
        %v1119 = vmax.f32 %v1117, %v1118
        %v1120 = vmax.f32 %v1110, %v1119
        %1121 = vst.msk [vmem:[%s456] sm:$0x1] %vm1094, %v1120
        %v1122 = vld [vmem:[%s462] sm:$0x1]
        %v1123 = vsel %vm1083, %v1060, inf
        %v1124 = vsel %vm1083, %v1061, inf
        %v1125 = vmin.f32 %v1123, %v1124
        %v1126 = vrot.slane %v1125, 4
        %v1127 = vmin.f32 %v1125, %v1126
        %v1128 = vrot.slane %v1127, 2
        %v1129 = vmin.f32 %v1127, %v1128
        %v1130 = vrot.slane %v1129, 1
        %v1131 = vmin.f32 %v1129, %v1130
        %v1132 = vmin.f32 %v1122, %v1131
        %1133 = vst.msk [vmem:[%s462] sm:$0x1] %vm1094, %v1132
        %s1134 = smul.u32 %s35, 2
        %s1135 = sadd.s32 %s1134, %s36
        %s1136 = smul.u32 2, %s1135
        %p1137 = scmp.lt.s32.totalorder %s34, 1
        %s1138 = scalar_select %p1137, %s34, 1
        %p1139 = scmp.lt.s32.totalorder %s1136, 7
        %s1140 = scalar_select %p1139, %s1136, 7
        %s1141 = smul.addr %s1138, 8
        %s1142 = sadd.s32 %s1140, %s1141
        %s1143 = smul.addr %s1142, 4
        %s1144 = scalar_lea.vmem %s4, %s1143
        %s1145 = sand.u32 %s202, 1
        %s1146 = scalar_lea.sflag [#allocation3], %s1145
        %s1147 = sand.u32 %s202, 1
        %s1148 = scalar_lea.vmem [#allocation2], %s1147
        %s1149 = sand.u32 %s29, 1
        %s1150 = scalar_lea.sflag [#allocation5], %s1149
        %s1151 = sand.u32 %s232, 1
        %s1152 = scalar_lea.vmem [#allocation4], %s1151
        %s1153 = sand.u32 %s29, 1
        %s1154 = scalar_lea.sflag [#allocation5], %s1153
        %s1155 = sand.u32 %s262, 1
        %s1156 = scalar_lea.vmem [#allocation6], %s1155
        %s1157 = sand.u32 %s292, 1
        %s1158 = scalar_lea.sflag [#allocation8], %s1157
        %s1159 = sand.u32 %s292, 1
        %s1160 = scalar_lea.vmem [#allocation7], %s1159
        // Predicated region
        $region41: #{tpu_custom_call.1} parent=35 // pred_check
          %p1161 = pneg %p182
        $region42: #{tpu_custom_call.1} parent=35 // pred_check_branch
          %1163 = sbr.rel (%p1161) target = $region44
        $region43: #{tpu_custom_call.1} parent=35 // pred_region
          %s1164 = smul.u32 %s35, 2
          %s1165 = sadd.s32 %s1164, %s36
          %s1166 = smul.u32 2, %s1165
        $region44: #{tpu_custom_call.1} parent=35 // pred_fallthru
          _
        // Predicated region
        $region45: #{tpu_custom_call.1} parent=35 // pred_check
          %p1167 = pneg %p212
        $region46: #{tpu_custom_call.1} parent=35 // pred_check_branch
          %1169 = sbr.rel (%p1167) target = $region48
        $region47: #{tpu_custom_call.1} parent=35 // pred_region
          %s1170 = smul.u32 %s34, 2
          %s1171 = sadd.s32 %s1170, %s35
          %s1173 = ssub.s32 16, 16
          %1174 = vsyncadd %s1146, %s1173
          %s1175 = smul.addr %s1171, 16
          %s1176 = scalar_lea.hbm %s5, %s1175
          %s1178 = sshll.u32 %s1148, 4
          %s1179 = int_to_ptr.vmem [resolvable:$true] %s1178
          %1181 = dma.vmem_to_hbm [thread:$0]  %s1179, 16, %s1176, %s1146
        $region48: #{tpu_custom_call.1} parent=35 // pred_fallthru
          _
        // Predicated region
        $region49: #{tpu_custom_call.1} parent=35 // pred_check
          %p1182 = pneg %p242
        $region50: #{tpu_custom_call.1} parent=35 // pred_check_branch
          %1184 = sbr.rel (%p1182) target = $region52
        $region51: #{tpu_custom_call.1} parent=35 // pred_region
          %s1185 = smul.u32 %s34, 2
          %s1186 = sadd.s32 %s1185, %s35
          %s1188 = ssub.s32 16, 16
          %1189 = vsyncadd %s1150, %s1188
          %s1190 = smul.addr %s1186, 16
          %s1191 = scalar_lea.hbm %s6, %s1190
          %s1193 = sshll.u32 %s1152, 4
          %s1194 = int_to_ptr.vmem [resolvable:$true] %s1193
          %1196 = dma.vmem_to_hbm [thread:$0]  %s1194, 16, %s1191, %s1150
        $region52: #{tpu_custom_call.1} parent=35 // pred_fallthru
          _
        // Predicated region
        $region53: #{tpu_custom_call.1} parent=35 // pred_check
          %p1197 = pneg %p272
        $region54: #{tpu_custom_call.1} parent=35 // pred_check_branch
          %1199 = sbr.rel (%p1197) target = $region56
        $region55: #{tpu_custom_call.1} parent=35 // pred_region
          %s1200 = smul.u32 %s34, 2
          %s1201 = sadd.s32 %s1200, %s35
          %s1203 = ssub.s32 16, 16
          %1204 = vsyncadd %s1154, %s1203
          %s1205 = smul.addr %s1201, 16
          %s1206 = scalar_lea.hbm %s7, %s1205
          %s1208 = sshll.u32 %s1156, 4
          %s1209 = int_to_ptr.vmem [resolvable:$true] %s1208
          %1211 = dma.vmem_to_hbm [thread:$0]  %s1209, 16, %s1206, %s1154
        $region56: #{tpu_custom_call.1} parent=35 // pred_fallthru
          _
        // Predicated region
        $region57: #{tpu_custom_call.1} parent=35 // pred_check
          %p1212 = pneg %p302
        $region58: #{tpu_custom_call.1} parent=35 // pred_check_branch
          %1214 = sbr.rel (%p1212) target = $region60
        $region59: #{tpu_custom_call.1} parent=35 // pred_region
          %s1215 = smul.u32 %s34, 2
          %s1216 = sadd.s32 %s1215, %s35
          %s1218 = ssub.s32 16, 16
          %1219 = vsyncadd %s1158, %s1218
          %s1220 = smul.addr %s1216, 16
          %s1221 = scalar_lea.hbm %s8, %s1220
          %s1223 = sshll.u32 %s1160, 4
          %s1224 = int_to_ptr.vmem [resolvable:$true] %s1223
          %1226 = dma.vmem_to_hbm [thread:$0]  %s1224, 16, %s1221, %s1158
        $region60: #{tpu_custom_call.1} parent=35 // pred_fallthru
          _
      $region36: #{tpu_custom_call.1} parent=5 // pred_fallthru
        _
      %p1227 = scmp.le.s32.totalorder 2, %s24
      // Predicated region
      $region61: #{tpu_custom_call.1} parent=5 // pred_check
        %p1228 = pneg %p1227
      $region62: #{tpu_custom_call.1} parent=5 // pred_check_branch
        %1230 = sbr.rel (%p1228) target = $region64
      $region63: #{tpu_custom_call.1} parent=5 // pred_region
        %s1231 = ssub.s32 %s24, 2
        // Predicated region
        $region65: #{tpu_custom_call.1} parent=63 // pred_check
          %p1232 = pneg %p188
        $region66: #{tpu_custom_call.1} parent=63 // pred_check_branch
          %1234 = sbr.rel (%p1232) target = $region68
        $region67: #{tpu_custom_call.1} parent=63 // pred_region
          %s1235 = smul.u32 %s38, 2
          %s1236 = sadd.s32 %s1235, %s39
          %s1237 = smul.u32 2, %s1236
          %p1238 = scmp.lt.s32.totalorder %s37, 1
          %s1239 = scalar_select %p1238, %s37, 1
          %p1240 = scmp.lt.s32.totalorder %s1237, 7
          %s1241 = scalar_select %p1240, %s1237, 7
          %s1242 = smul.addr %s1239, 8
          %s1243 = sadd.s32 %s1241, %s1242
          %s1244 = smul.addr %s1243, 4
          %s1245 = scalar_lea.vmem %s4, %s1244
        $region68: #{tpu_custom_call.1} parent=63 // pred_fallthru
          _
        // Predicated region
        $region69: #{tpu_custom_call.1} parent=63 // pred_check
          %p1246 = pneg %p218
        $region70: #{tpu_custom_call.1} parent=63 // pred_check_branch
          %1248 = sbr.rel (%p1246) target = $region72
        $region71: #{tpu_custom_call.1} parent=63 // pred_region
          %s1249 = sand.u32 %s203, 1
          %s1250 = scalar_lea.sflag [#allocation3], %s1249
          %s1251 = sand.u32 %s203, 1
          %s1252 = scalar_lea.vmem [#allocation2], %s1251
          %1253 = dma.done %s1250, 16
        $region72: #{tpu_custom_call.1} parent=63 // pred_fallthru
          _
        // Predicated region
        $region73: #{tpu_custom_call.1} parent=63 // pred_check
          %p1254 = pneg %p248
        $region74: #{tpu_custom_call.1} parent=63 // pred_check_branch
          %1256 = sbr.rel (%p1254) target = $region76
        $region75: #{tpu_custom_call.1} parent=63 // pred_region
          %s1257 = sand.u32 %s30, 1
          %s1258 = scalar_lea.sflag [#allocation5], %s1257
          %s1259 = sand.u32 %s233, 1
          %s1260 = scalar_lea.vmem [#allocation4], %s1259
          %1261 = dma.done %s1258, 16
        $region76: #{tpu_custom_call.1} parent=63 // pred_fallthru
          _
        // Predicated region
        $region77: #{tpu_custom_call.1} parent=63 // pred_check
          %p1262 = pneg %p278
        $region78: #{tpu_custom_call.1} parent=63 // pred_check_branch
          %1264 = sbr.rel (%p1262) target = $region80
        $region79: #{tpu_custom_call.1} parent=63 // pred_region
          %s1265 = sand.u32 %s30, 1
          %s1266 = scalar_lea.sflag [#allocation5], %s1265
          %s1267 = sand.u32 %s263, 1
          %s1268 = scalar_lea.vmem [#allocation6], %s1267
          %1269 = dma.done %s1266, 16
        $region80: #{tpu_custom_call.1} parent=63 // pred_fallthru
          _
        // Predicated region
        $region81: #{tpu_custom_call.1} parent=63 // pred_check
          %p1270 = pneg %p308
        $region82: #{tpu_custom_call.1} parent=63 // pred_check_branch
          %1272 = sbr.rel (%p1270) target = $region84
        $region83: #{tpu_custom_call.1} parent=63 // pred_region
          %s1273 = sand.u32 %s293, 1
          %s1274 = scalar_lea.sflag [#allocation8], %s1273
          %s1275 = sand.u32 %s293, 1
          %s1276 = scalar_lea.vmem [#allocation7], %s1275
          %1277 = dma.done %s1274, 16
        $region84: #{tpu_custom_call.1} parent=63 // pred_fallthru
          _
      $region64: #{tpu_custom_call.1} parent=5 // pred_fallthru
        _
    $region6: #{tpu_custom_call.1} parent=1 // loop_footer
      %s28 = sadd.s32 1, %s24
    $region7: #{tpu_custom_call.1} parent=1 // loop_footer_branch
      %23 = sbr.rel target = $region3
    $region8: #{tpu_custom_call.1} parent=1 // loop_exit
      _
    %1278 = vsyncpa [#allocation3], 1
    %s1279 = scalar_lea.sflag [#allocation3], 1
    %1280 = vsyncpa %s1279, 1
    %1281 = vsyncpa [#allocation5], 1
    %s1282 = scalar_lea.sflag [#allocation5], 1
    %1283 = vsyncpa %s1282, 1
    %1284 = vsyncpa [#allocation8], 1
    %s1285 = scalar_lea.sflag [#allocation8], 1
    %1286 = vsyncpa %s1285, 1

</llo_original>
